<compile_context>
chip_gen: v5e
topology: v5e:2x2
jax: 0.10.0
libtpu: 0.0.40
codegen_flags: <defaults>
</compile_context>

<pallas_src>
import functools

import jax
import jax.numpy as jnp
from jax import lax
from jax.experimental import pallas as pl
from jax.experimental.pallas import tpu as pltpu

LANE = 128
MIB = 1024 * 1024


def _round_up(x, m):
    return (x + m - 1) // m * m


def _vmem_limit_bytes():
    """Generation-aware scoped-VMEM limit.

    ~52 MiB on 64-MiB parts (v7x), ~100 MiB on 128-MiB parts (v5e/v6e);
    conservative fallback when the query is unavailable.
    """
    cap = 64 * MIB
    try:
        info = pltpu.get_tpu_info()
        cap = int(getattr(info, "vmem_capacity_bytes", cap)) or cap
    except Exception:
        pass
    return max(32 * MIB, min(cap - 12 * MIB, 100 * MIB))


# ---------------------------------------------------------------------------
# Small-graph path: one invocation, everything resident in VMEM, k unrolled.
# ---------------------------------------------------------------------------
def appna_small_kernel(adj_ref, nrm_ref, feat_ref,
                       w1_ref, b1_ref, w2_ref, b2_ref, out_ref, *, k, alpha):
    adj = adj_ref[...]                                 # (n, n) bf16 (0/1)
    nrm = nrm_ref[...]                                 # (n, 1) f32  D^{-1/2}
    feat = feat_ref[...].astype(jnp.float32)           # (n, f_in)  h0
    scale_g = (1.0 - alpha) * (nrm * nrm)
    scale_h = (1.0 - alpha) * nrm
    a_nf = (alpha * nrm) * feat
    a_f = alpha * feat
    g = (nrm * feat).astype(jnp.bfloat16)               # g_0 = D^{-1/2} h0
    h = feat
    for s in range(1, k + 1):                           # k is static -> unrolled
        # ((A + I) @ g_{s-1}); bf16 MXU matmul, f32 accumulation.
        t = (jnp.dot(adj, g, preferred_element_type=jnp.float32)
             + g.astype(jnp.float32))
        if s == k:
            h = scale_h * t + a_f
        else:
            g = (scale_g * t + a_nf).astype(jnp.bfloat16)
    hid = jnp.dot(h.astype(jnp.bfloat16), w1_ref[...],
                  preferred_element_type=jnp.float32) + b1_ref[...]
    hid = jnp.maximum(hid, 0.0)
    out = jnp.dot(hid.astype(jnp.bfloat16), w2_ref[...],
                  preferred_element_type=jnp.float32) + b2_ref[...]
    out_ref[...] = out.astype(out_ref.dtype)


# ---------------------------------------------------------------------------
# Tiled path: grid = (k, num_row_tiles), both axes sequential ("arbitrary").
# Step s consumes g_s (g_0 precomputed in the wrapper, seeded into scratch at
# (0, 0)) and produces g_{s+1} = D^{-1/2} h_{s+1}; the final step produces
# h_k and runs the fused MLP head.  The normalized adjacency is never built:
# D^{-1/2} factors are folded into (TM, 1) scale vectors around (A+I) @ g.
# ---------------------------------------------------------------------------
def appna_tiled_kernel(adj_ref, nrm_ref, feat_ref, g0_ref,
                       w1_ref, b1_ref, w2_ref, b2_ref,
                       out_ref, g_ref, *, k, alpha, tm, adj_resident):
    s = pl.program_id(0)                    # propagation step (0-based)
    i = pl.program_id(1)                    # destination-row tile
    row0 = pl.multiple_of(i * tm, tm)

    # Seed the ping-pong scratch with g_0 exactly once (cheap VMEM->VMEM copy).
    @pl.when((s == 0) & (i == 0))
    def _seed():
        g_ref[0, :, :] = g0_ref[...]

    if adj_resident:
        # Adjacency is a constant full-array block (DMA'd once, revisited);
        # slice this step's destination rows in-kernel.
        adj_tile = adj_ref[pl.ds(row0, tm), :]          # (tm, N) bf16
    else:
        adj_tile = adj_ref[...]                         # streamed (tm, N) bf16

    nrm = nrm_ref[...]                                  # (tm, 1) f32
    feat = feat_ref[...].astype(jnp.float32)            # (tm, f_in) f32

    rslot = s & 1
    g_self = g_ref[rslot, pl.ds(row0, tm), :].astype(jnp.float32)
    # ((A + I) @ g_s) restricted to this row tile; bf16 MXU, f32 accumulation.
    t = jnp.dot(adj_tile, g_ref[rslot],
                preferred_element_type=jnp.float32) + g_self

    @pl.when(s < k - 1)
    def _intermediate():
        # g_{s+1} = D^{-1/2} h_{s+1}; alpha / (1-alpha) folded into (tm,1) vecs.
        g_new = ((1.0 - alpha) * (nrm * nrm)) * t + (alpha * nrm) * feat
        g_ref[1 - rslot, pl.ds(row0, tm), :] = g_new.astype(g_ref.dtype)

    @pl.when(s == k - 1)
    def _finalize():
        h = (1.0 - alpha) * nrm * t + alpha * feat
        hid = jnp.dot(h.astype(jnp.bfloat16), w1_ref[...],
                      preferred_element_type=jnp.float32) + b1_ref[...]
        hid = jnp.maximum(hid, 0.0)
        out = jnp.dot(hid.astype(jnp.bfloat16), w2_ref[...],
                      preferred_element_type=jnp.float32) + b2_ref[...]
        out_ref[...] = out.astype(out_ref.dtype)


def appna_forward(adj, feat, w1, b1, w2, b2, *, k, alpha, tm=128,
                  force_path=None):
    assert k >= 1, "APPNP propagation requires k >= 1"
    assert force_path in (None, "small", "tiled_resident", "tiled_stream")
    n = feat.shape[0]
    d_in, d_hid = w1.shape
    d_out = w2.shape[1]
    alpha = float(alpha)

    # Lane-dense padding (zero padding is semantically inert: padded nodes are
    # isolated with feat=0; padded feature/output columns stay 0).
    n_pad = _round_up(n, max(tm, LANE))
    f_in = _round_up(d_in, LANE)
    f_hid = _round_up(d_hid, LANE)
    f_out = _round_up(d_out, LANE)

    # Wrapper-side setup (was a dedicated in-kernel adjacency pass): degrees,
    # D^{-1/2} and g_0 = D^{-1/2} h0.  0/1 adjacency -> bf16 is lossless.
    # TODO(synk): fp8 adjacency (0/1 exact) would halve the stream on v7x
    # when the adjacency cannot be made resident.
    adj_p = jnp.zeros((n_pad, n_pad), jnp.bfloat16).at[:n, :n].set(
        adj.astype(jnp.bfloat16))
    feat_p = jnp.zeros((n_pad, f_in), jnp.bfloat16).at[:n, :d_in].set(
        feat.astype(jnp.bfloat16))
    deg = jnp.sum(adj.astype(jnp.float32), axis=1, keepdims=True) + 1.0
    nrm = lax.rsqrt(deg)                                   # D^{-1/2} (in-deg + self loop)
    nrm_p = jnp.ones((n_pad, 1), jnp.float32).at[:n, :].set(nrm)
    g0_p = (nrm_p * feat_p.astype(jnp.float32)).astype(jnp.bfloat16)

    w1_p = jnp.zeros((f_in, f_hid), jnp.bfloat16).at[:d_in, :d_hid].set(
        w1.astype(jnp.bfloat16))
    b1_p = jnp.zeros((1, f_hid), jnp.float32).at[:, :d_hid].set(
        b1.reshape(1, -1).astype(jnp.float32))
    w2_p = jnp.zeros((f_hid, f_out), jnp.bfloat16).at[:d_hid, :d_out].set(
        w2.astype(jnp.bfloat16))
    b2_p = jnp.zeros((1, f_out), jnp.float32).at[:, :d_out].set(
        b2.reshape(1, -1).astype(jnp.float32))

    vmem_limit = _vmem_limit_bytes()
    mlp_flops = 2 * n_pad * (f_in * f_hid + f_hid * f_out)
    prop_flops = 2 * k * n_pad * n_pad * f_in
    weight_bytes = (f_in * f_hid + f_hid * f_out) * 2 + (f_hid + f_out) * 4

    # Path selection.
    path = force_path
    if path is None:
        if n_pad <= 1024:
            path = "small"
        else:
            # Worst-case (double-buffered) VMEM audit for resident adjacency.
            resident_bytes = (2 * n_pad * n_pad * 2      # adj (bf16)
                              + tm * n_pad * 2           # in-kernel row slice
                              + 4 * n_pad * f_in * 2     # g0 input + ping/pong
                              + 4 * MIB)                 # tiles / weights / slack
            path = "tiled_resident" if resident_bytes <= vmem_limit else "tiled_stream"
            # TODO(synk): add a source-node (K-axis) tiled variant for graphs
            # beyond the streaming VMEM budget.

    if path == "small":
        kernel = functools.partial(appna_small_kernel, k=k, alpha=alpha)
        out_p = pl.pallas_call(
            kernel,
            out_shape=jax.ShapeDtypeStruct((n_pad, f_out), jnp.float32),
            grid=(1,),
            in_specs=[
                pl.BlockSpec((n_pad, n_pad), lambda i: (0, 0)),   # adj
                pl.BlockSpec((n_pad, 1), lambda i: (0, 0)),       # D^{-1/2}
                pl.BlockSpec((n_pad, f_in), lambda i: (0, 0)),    # h0 (bf16)
                pl.BlockSpec((f_in, f_hid), lambda i: (0, 0)),    # W1
                pl.BlockSpec((1, f_hid), lambda i: (0, 0)),       # b1
                pl.BlockSpec((f_hid, f_out), lambda i: (0, 0)),   # W2
                pl.BlockSpec((1, f_out), lambda i: (0, 0)),       # b2
            ],
            out_specs=pl.BlockSpec((n_pad, f_out), lambda i: (0, 0)),
            compiler_params=pltpu.CompilerParams(
                dimension_semantics=("arbitrary",),
                vmem_limit_bytes=vmem_limit),
            cost_estimate=pl.CostEstimate(
                flops=prop_flops + mlp_flops, transcendentals=0,
                bytes_accessed=(n_pad * n_pad * 2 + n_pad * (f_in * 2 + 4)
                                + weight_bytes + n_pad * f_out * 4)),
        )(adj_p, nrm_p, feat_p, w1_p, b1_p, w2_p, b2_p)
        return out_p[:n, :d_out]

    # ---- Tiled path ----
    adj_resident = (path == "tiled_resident")
    n_tiles = n_pad // tm
    grid = (k, n_tiles)

    if adj_resident:
        adj_spec = pl.BlockSpec((n_pad, n_pad), lambda s, i: (0, 0))  # DMA'd once
    else:
        adj_spec = pl.BlockSpec((tm, n_pad), lambda s, i: (i, 0))     # streamed rows

    # Output blocks only materialize at the final propagation step: map every
    # earlier step onto block (0, 0) so no never-written VMEM is flushed to
    # HBM and only n_tiles output write-backs happen in total.
    def out_index(s, i):
        return (jnp.where(s == k - 1, i, 0), 0)

    kernel = functools.partial(appna_tiled_kernel, k=k, alpha=alpha, tm=tm,
                               adj_resident=adj_resident)
    adj_reads = 1 if adj_resident else k
    out_p = pl.pallas_call(
        kernel,
        out_shape=jax.ShapeDtypeStruct((n_pad, f_out), jnp.float32),
        grid_spec=pltpu.PrefetchScalarGridSpec(
            num_scalar_prefetch=0,
            grid=grid,
            in_specs=[
                adj_spec,
                pl.BlockSpec((tm, 1), lambda s, i: (i, 0)),         # D^{-1/2} rows
                pl.BlockSpec((tm, f_in), lambda s, i: (i, 0)),      # h0 rows (bf16)
                pl.BlockSpec((n_pad, f_in), lambda s, i: (0, 0)),   # g0 (resident)
                pl.BlockSpec((f_in, f_hid), lambda s, i: (0, 0)),   # W1
                pl.BlockSpec((1, f_hid), lambda s, i: (0, 0)),      # b1
                pl.BlockSpec((f_hid, f_out), lambda s, i: (0, 0)),  # W2
                pl.BlockSpec((1, f_out), lambda s, i: (0, 0)),      # b2
            ],
            out_specs=pl.BlockSpec((tm, f_out), out_index),
            scratch_shapes=[
                pltpu.VMEM((2, n_pad, f_in), jnp.bfloat16),         # g ping/pong
            ],
        ),
        compiler_params=pltpu.CompilerParams(
            # Both axes sequential: step s+1 reads the g_s written by every row
            # tile of step s through the shared (per-core) VMEM scratch.
            # TODO(synk): v7x dual-TensorCore split of the row-tile axis via
            # core_map + VMEM_SHARED g + per-step core_barrier.
            dimension_semantics=("arbitrary", "arbitrary"),
            vmem_limit_bytes=vmem_limit),
        cost_estimate=pl.CostEstimate(
            flops=prop_flops + mlp_flops, transcendentals=0,
            bytes_accessed=(adj_reads * n_pad * n_pad * 2
                            + n_pad * f_in * 2
                            + k * n_pad * (f_in * 2 + 4)
                            + weight_bytes + n_pad * f_out * 4)),
    )(adj_p, nrm_p, feat_p, g0_p, w1_p, b1_p, w2_p, b2_p)
    return out_p[:n, :d_out]


# ---------------------------------------------------------------------------
# References
# ---------------------------------------------------------------------------
def appna_reference_f32(adj, feat, w1, b1, w2, b2, *, k, alpha):
    """Pure-f32 reference of the original module semantics."""
    n = adj.shape[0]
    hp = lax.Precision.HIGHEST
    a = adj.astype(jnp.float32) + jnp.eye(n, dtype=jnp.float32)
    deg = a.sum(axis=1, keepdims=True)                 # >= 1 (self loop)
    nrm = 1.0 / jnp.sqrt(deg)
    a_hat = nrm * a * nrm.T
    h0 = feat.astype(jnp.float32)
    h = h0
    for _ in range(k):
        h = (1.0 - alpha) * jnp.dot(a_hat, h, precision=hp) + alpha * h0
    hid = jnp.maximum(jnp.dot(h, w1, precision=hp) + b1.reshape(1, -1), 0.0)
    return jnp.dot(hid, w2, precision=hp) + b2.reshape(1, -1)


def appna_reference_bf16(adj, feat, w1, b1, w2, b2, *, k, alpha):
    """Pure-JAX emulation of the exact arithmetic the Pallas kernels perform."""
    a = adj.astype(jnp.bfloat16)
    deg = jnp.sum(adj.astype(jnp.float32), axis=1, keepdims=True) + 1.0
    nrm = lax.rsqrt(deg)
    feat_f = feat.astype(jnp.bfloat16).astype(jnp.float32)
    g = (nrm * feat_f).astype(jnp.bfloat16)
    h = feat_f
    for s in range(1, k + 1):
        t = (jnp.dot(a, g, preferred_element_type=jnp.float32)
             + g.astype(jnp.float32))
        h = (1.0 - alpha) * nrm * t + alpha * feat_f
        if s < k:
            g = (((1.0 - alpha) * (nrm * nrm)) * t
                 + (alpha * nrm) * feat_f).astype(jnp.bfloat16)
    hid = jnp.maximum(
        jnp.dot(h.astype(jnp.bfloat16), w1.astype(jnp.bfloat16),
                preferred_element_type=jnp.float32) + b1.reshape(1, -1), 0.0)
    return jnp.dot(hid.astype(jnp.bfloat16), w2.astype(jnp.bfloat16),
                   preferred_element_type=jnp.float32) + b2.reshape(1, -1)


if __name__ == "__main__":
    K = 3
    ALPHA = 0.1
    N_NODES = 256          # 2 row tiles of 128 -> exercises the tiled grid
    INPUT_DIM = 16
    HIDDEN_DIM = 32
    OUTPUT_DIM = 8

    key = jax.random.PRNGKey(0)
    k_adj, k_feat, k_w1, k_b1, k_w2, k_b2 = jax.random.split(key, 6)

    # Synthetic undirected graph without self loops (the layer adds them).
    a_rand = (jax.random.uniform(k_adj, (N_NODES, N_NODES)) < 0.1).astype(
        jnp.float32)
    adj = jnp.maximum(a_rand, a_rand.T)
    adj = adj * (1.0 - jnp.eye(N_NODES, dtype=jnp.float32))

    feat = jax.random.normal(k_feat, (N_NODES, INPUT_DIM), dtype=jnp.float32)
    w1 = jax.random.normal(k_w1, (INPUT_DIM, HIDDEN_DIM), dtype=jnp.float32) * 0.1
    b1 = jax.random.normal(k_b1, (1, HIDDEN_DIM), dtype=jnp.float32) * 0.01
    w2 = jax.random.normal(k_w2, (HIDDEN_DIM, OUTPUT_DIM), dtype=jnp.float32) * 0.1
    b2 = jax.random.normal(k_b2, (1, OUTPUT_DIM), dtype=jnp.float32) * 0.01

    # Auto path: small graph -> single-invocation fully-resident kernel.
    out = jax.block_until_ready(
        appna_forward(adj, feat, w1, b1, w2, b2, k=K, alpha=ALPHA))
    assert out.shape == (N_NODES, OUTPUT_DIM)

    # Also exercise both tiled variants (resident / streamed adjacency) and k=1.
    out_res = jax.block_until_ready(appna_forward(
        adj, feat, w1, b1, w2, b2, k=K, alpha=ALPHA, force_path="tiled_resident"))
    out_str = jax.block_until_ready(appna_forward(
        adj, feat, w1, b1, w2, b2, k=K, alpha=ALPHA, force_path="tiled_stream"))
    out_k1 = jax.block_until_ready(appna_forward(
        adj, feat, w1, b1, w2, b2, k=1, alpha=ALPHA, force_path="tiled_resident"))

    # Strict checks against an emulation of the kernels' bf16 arithmetic.
    ref_exact = appna_reference_bf16(adj, feat, w1, b1, w2, b2, k=K, alpha=ALPHA)
    assert jnp.allclose(out, ref_exact, atol=5e-3, rtol=5e-3), (
        f"small path vs bf16 ref: {float(jnp.max(jnp.abs(out - ref_exact)))}")
    assert jnp.allclose(out_res, ref_exact, atol=5e-3, rtol=5e-3), (
        f"tiled-resident vs bf16 ref: {float(jnp.max(jnp.abs(out_res - ref_exact)))}")
    assert jnp.allclose(out_str, ref_exact, atol=5e-3, rtol=5e-3), (
        f"tiled-stream vs bf16 ref: {float(jnp.max(jnp.abs(out_str - ref_exact)))}")
    ref_k1 = appna_reference_bf16(adj, feat, w1, b1, w2, b2, k=1, alpha=ALPHA)
    assert jnp.allclose(out_k1, ref_k1, atol=5e-3, rtol=5e-3), (
        f"tiled k=1 vs bf16 ref: {float(jnp.max(jnp.abs(out_k1 - ref_k1)))}")

    # Loose check against the full-f32 module semantics.
    ref_f32 = appna_reference_f32(adj, feat, w1, b1, w2, b2, k=K, alpha=ALPHA)
    assert jnp.allclose(out, ref_f32, atol=3e-2, rtol=3e-2), (
        f"vs f32 reference: {float(jnp.max(jnp.abs(out - ref_f32)))}")

    print("KERNEL_OK")
</pallas_src>

<mosaic_0001>
module attributes {stable_mosaic.version = 11 : i64} {
  func.func @appna_small_kernel(%arg0: i32, %arg1: memref<256x256xbf16, #tpu.memory_space<vmem>>, %arg2: memref<256x1xf32, #tpu.memory_space<vmem>>, %arg3: memref<256x128xbf16, #tpu.memory_space<vmem>>, %arg4: memref<128x128xbf16, #tpu.memory_space<vmem>>, %arg5: memref<1x128xf32, #tpu.memory_space<vmem>>, %arg6: memref<128x128xbf16, #tpu.memory_space<vmem>>, %arg7: memref<1x128xf32, #tpu.memory_space<vmem>>, %arg8: memref<256x128xf32, #tpu.memory_space<vmem>>) attributes {dimension_semantics = [#tpu.dimension_semantics<arbitrary>], iteration_bounds = array<i64: 1>, scalar_prefetch = 0 : i64, scratch_operands = 0 : i64, tpu.core_type = #tpu.core_type<tc>, window_params = [{pipeline_mode = #tpu.pipeline_mode<synchronous>, transform_indices = @transform_0, window_bounds = array<i64: 256, 256>}, {pipeline_mode = #tpu.pipeline_mode<synchronous>, transform_indices = @transform_1, window_bounds = array<i64: 256, 1>}, {pipeline_mode = #tpu.pipeline_mode<synchronous>, transform_indices = @transform_2, window_bounds = array<i64: 256, 128>}, {pipeline_mode = #tpu.pipeline_mode<synchronous>, transform_indices = @transform_3, window_bounds = array<i64: 128, 128>}, {pipeline_mode = #tpu.pipeline_mode<synchronous>, transform_indices = @transform_4, window_bounds = array<i64: 1, 128>}, {pipeline_mode = #tpu.pipeline_mode<synchronous>, transform_indices = @transform_5, window_bounds = array<i64: 128, 128>}, {pipeline_mode = #tpu.pipeline_mode<synchronous>, transform_indices = @transform_6, window_bounds = array<i64: 1, 128>}, {pipeline_mode = #tpu.pipeline_mode<synchronous>, transform_indices = @transform_7, window_bounds = array<i64: 256, 128>}]} {
    %c0 = arith.constant 0 : index
    %c0_0 = arith.constant 0 : index
    %0 = vector.load %arg1[%c0, %c0_0] : memref<256x256xbf16, #tpu.memory_space<vmem>>, vector<256x256xbf16>
    %c0_1 = arith.constant 0 : index
    %c0_2 = arith.constant 0 : index
    %1 = vector.load %arg2[%c0_1, %c0_2] : memref<256x1xf32, #tpu.memory_space<vmem>>, vector<256x1xf32>
    %c0_3 = arith.constant 0 : index
    %c0_4 = arith.constant 0 : index
    %2 = vector.load %arg3[%c0_3, %c0_4] : memref<256x128xbf16, #tpu.memory_space<vmem>>, vector<256x128xbf16>
    %3 = arith.extf %2 : vector<256x128xbf16> to vector<256x128xf32>
    %4 = arith.mulf %1, %1 : vector<256x1xf32>
    %cst = arith.constant 0.899999976 : f32
    %5 = vector.broadcast %cst : f32 to vector<256x1xf32>
    %6 = arith.mulf %5, %4 : vector<256x1xf32>
    %cst_5 = arith.constant 0.899999976 : f32
    %7 = vector.broadcast %cst_5 : f32 to vector<256x1xf32>
    %8 = arith.mulf %7, %1 : vector<256x1xf32>
    %cst_6 = arith.constant 1.000000e-01 : f32
    %9 = vector.broadcast %cst_6 : f32 to vector<256x1xf32>
    %10 = arith.mulf %9, %1 : vector<256x1xf32>
    %11 = vector.broadcast %10 : vector<256x1xf32> to vector<256x128xf32>
    %12 = arith.mulf %11, %3 : vector<256x128xf32>
    %cst_7 = arith.constant 1.000000e-01 : f32
    %13 = vector.broadcast %cst_7 : f32 to vector<256x128xf32>
    %14 = arith.mulf %13, %3 : vector<256x128xf32>
    %15 = vector.broadcast %1 : vector<256x1xf32> to vector<256x128xf32>
    %16 = arith.mulf %15, %3 : vector<256x128xf32>
    %17 = arith.truncf %16 : vector<256x128xf32> to vector<256x128xbf16>
    %cst_8 = arith.constant dense<0.000000e+00> : vector<256x128xf32>
    %18 = tpu.matmul %0, %17, %cst_8 {dimension_numbers = #tpu.dot_dimension_numbers<[1], [0], [0], [1], [0, 0, 1, 1], [], []>} : vector<256x256xbf16>, vector<256x128xbf16>, vector<256x128xf32> -> vector<256x128xf32>
    %19 = arith.extf %17 : vector<256x128xbf16> to vector<256x128xf32>
    %20 = arith.addf %18, %19 : vector<256x128xf32>
    %21 = vector.broadcast %6 : vector<256x1xf32> to vector<256x128xf32>
    %22 = arith.mulf %21, %20 : vector<256x128xf32>
    %23 = arith.addf %22, %12 : vector<256x128xf32>
    %24 = arith.truncf %23 : vector<256x128xf32> to vector<256x128xbf16>
    %cst_9 = arith.constant dense<0.000000e+00> : vector<256x128xf32>
    %25 = tpu.matmul %0, %24, %cst_9 {dimension_numbers = #tpu.dot_dimension_numbers<[1], [0], [0], [1], [0, 0, 1, 1], [], []>} : vector<256x256xbf16>, vector<256x128xbf16>, vector<256x128xf32> -> vector<256x128xf32>
    %26 = arith.extf %24 : vector<256x128xbf16> to vector<256x128xf32>
    %27 = arith.addf %25, %26 : vector<256x128xf32>
    %28 = vector.broadcast %6 : vector<256x1xf32> to vector<256x128xf32>
    %29 = arith.mulf %28, %27 : vector<256x128xf32>
    %30 = arith.addf %29, %12 : vector<256x128xf32>
    %31 = arith.truncf %30 : vector<256x128xf32> to vector<256x128xbf16>
    %cst_10 = arith.constant dense<0.000000e+00> : vector<256x128xf32>
    %32 = tpu.matmul %0, %31, %cst_10 {dimension_numbers = #tpu.dot_dimension_numbers<[1], [0], [0], [1], [0, 0, 1, 1], [], []>} : vector<256x256xbf16>, vector<256x128xbf16>, vector<256x128xf32> -> vector<256x128xf32>
    %33 = arith.extf %31 : vector<256x128xbf16> to vector<256x128xf32>
    %34 = arith.addf %32, %33 : vector<256x128xf32>
    %35 = vector.broadcast %8 : vector<256x1xf32> to vector<256x128xf32>
    %36 = arith.mulf %35, %34 : vector<256x128xf32>
    %37 = arith.addf %36, %14 : vector<256x128xf32>
    %38 = arith.truncf %37 : vector<256x128xf32> to vector<256x128xbf16>
    %c0_11 = arith.constant 0 : index
    %c0_12 = arith.constant 0 : index
    %39 = vector.load %arg4[%c0_11, %c0_12] : memref<128x128xbf16, #tpu.memory_space<vmem>>, vector<128x128xbf16>
    %cst_13 = arith.constant dense<0.000000e+00> : vector<256x128xf32>
    %40 = tpu.matmul %38, %39, %cst_13 {dimension_numbers = #tpu.dot_dimension_numbers<[1], [0], [0], [1], [0, 0, 1, 1], [], []>} : vector<256x128xbf16>, vector<128x128xbf16>, vector<256x128xf32> -> vector<256x128xf32>
    %c0_14 = arith.constant 0 : index
    %c0_15 = arith.constant 0 : index
    %41 = vector.load %arg5[%c0_14, %c0_15] : memref<1x128xf32, #tpu.memory_space<vmem>>, vector<1x128xf32>
    %42 = vector.broadcast %41 : vector<1x128xf32> to vector<256x128xf32>
    %43 = arith.addf %40, %42 : vector<256x128xf32>
    %cst_16 = arith.constant 0.000000e+00 : f32
    %44 = vector.broadcast %cst_16 : f32 to vector<256x128xf32>
    %45 = arith.maximumf %43, %44 : vector<256x128xf32>
    %46 = arith.truncf %45 : vector<256x128xf32> to vector<256x128xbf16>
    %c0_17 = arith.constant 0 : index
    %c0_18 = arith.constant 0 : index
    %47 = vector.load %arg6[%c0_17, %c0_18] : memref<128x128xbf16, #tpu.memory_space<vmem>>, vector<128x128xbf16>
    %cst_19 = arith.constant dense<0.000000e+00> : vector<256x128xf32>
    %48 = tpu.matmul %46, %47, %cst_19 {dimension_numbers = #tpu.dot_dimension_numbers<[1], [0], [0], [1], [0, 0, 1, 1], [], []>} : vector<256x128xbf16>, vector<128x128xbf16>, vector<256x128xf32> -> vector<256x128xf32>
    %c0_20 = arith.constant 0 : index
    %c0_21 = arith.constant 0 : index
    %49 = vector.load %arg7[%c0_20, %c0_21] : memref<1x128xf32, #tpu.memory_space<vmem>>, vector<1x128xf32>
    %50 = vector.broadcast %49 : vector<1x128xf32> to vector<256x128xf32>
    %51 = arith.addf %48, %50 : vector<256x128xf32>
    %c0_22 = arith.constant 0 : index
    %c0_23 = arith.constant 0 : index
    %52 = vector.load %arg8[%c0_22, %c0_23] : memref<256x128xf32, #tpu.memory_space<vmem>>, vector<256x128xf32>
    tpu.vector_store %arg8[%c0_22, %c0_23], %51 {strides = array<i32>} : memref<256x128xf32, #tpu.memory_space<vmem>>, vector<256x128xf32>,
    return
  }
  func.func @transform_0(%arg0: i32) -> (i32, i32) {
    %c0_i32 = arith.constant 0 : i32
    %c0_i32_0 = arith.constant 0 : i32
    %c0_i32_1 = arith.constant 0 : i32
    return %c0_i32, %c0_i32_0 : i32, i32
  }
  func.func @transform_1(%arg0: i32) -> (i32, i32) {
    %c0_i32 = arith.constant 0 : i32
    %c0_i32_0 = arith.constant 0 : i32
    %c0_i32_1 = arith.constant 0 : i32
    return %c0_i32, %c0_i32_0 : i32, i32
  }
  func.func @transform_2(%arg0: i32) -> (i32, i32) {
    %c0_i32 = arith.constant 0 : i32
    %c0_i32_0 = arith.constant 0 : i32
    %c0_i32_1 = arith.constant 0 : i32
    return %c0_i32, %c0_i32_0 : i32, i32
  }
  func.func @transform_3(%arg0: i32) -> (i32, i32) {
    %c0_i32 = arith.constant 0 : i32
    %c0_i32_0 = arith.constant 0 : i32
    %c0_i32_1 = arith.constant 0 : i32
    return %c0_i32, %c0_i32_0 : i32, i32
  }
  func.func @transform_4(%arg0: i32) -> (i32, i32) {
    %c0_i32 = arith.constant 0 : i32
    %c0_i32_0 = arith.constant 0 : i32
    %c0_i32_1 = arith.constant 0 : i32
    return %c0_i32, %c0_i32_0 : i32, i32
  }
  func.func @transform_5(%arg0: i32) -> (i32, i32) {
    %c0_i32 = arith.constant 0 : i32
    %c0_i32_0 = arith.constant 0 : i32
    %c0_i32_1 = arith.constant 0 : i32
    return %c0_i32, %c0_i32_0 : i32, i32
  }
  func.func @transform_6(%arg0: i32) -> (i32, i32) {
    %c0_i32 = arith.constant 0 : i32
    %c0_i32_0 = arith.constant 0 : i32
    %c0_i32_1 = arith.constant 0 : i32
    return %c0_i32, %c0_i32_0 : i32, i32
  }
  func.func @transform_7(%arg0: i32) -> (i32, i32) {
    %c0_i32 = arith.constant 0 : i32
    %c0_i32_0 = arith.constant 0 : i32
    %c0_i32_1 = arith.constant 0 : i32
    return %c0_i32, %c0_i32_0 : i32, i32
  }
}

</mosaic_0001>

<llo_original>
// kernel: tpu_custom_call.1
$region0: #{tpu_custom_call.1}
  #allocation0 [shape = 'u32[]', space=smem, size = 0x4, offset = 0x4, fixed_abs, tag = 'smem constant byte address 0x4 - core index']
  #allocation1 [shape = 'u32[72,128]{1,0:T(1,128)}', space=vmem, size = 0x9000, scoped, tag = 'internal scratch']
  %s0 = inlined_call_operand.vmem [shape: bf16[256,256], index: 0, kind: input, shape index: {}]
  %s1 = inlined_call_operand.vmem [shape: f32[256,1], index: 1, kind: input, shape index: {}]
  %s2 = inlined_call_operand.hbm [shape: bf16[256,128], index: 2, kind: input, shape index: {}]
  %s3 = inlined_call_operand.hbm [shape: bf16[128,128], index: 3, kind: input, shape index: {}]
  %s4 = inlined_call_operand.vmem [shape: f32[1,128], index: 4, kind: input, shape index: {}]
  %s5 = inlined_call_operand.hbm [shape: bf16[128,128], index: 5, kind: input, shape index: {}]
  %s6 = inlined_call_operand.vmem [shape: f32[1,128], index: 6, kind: input, shape index: {}]
  %s7 = inlined_call_operand.hbm [shape: f32[256,128], index: 7, kind: output, shape index: {}]
  %s8 = sld [smem:[#allocation0]]
  $region50: #{tpu_custom_call.1} parent=0
    _
  %s10 = ssub.s32 1, %s8
  %s11 = scalar_select 0, %s10, %s8
  $region1: #{tpu_custom_call.1} parent=0
    #allocation2 [shape = 'u8[65536]{0}', space=vmem, size = 0x10000, scoped, tag = 'input window, operand 2, single buffered']
    #allocation3 [shape = 's32[1]{0}', space=sflag, size = 0x4, scoped, tag = 'scoped memory for tpu_custom_call.1']
    #allocation4 [shape = 's32[1]{0}', space=sflag, size = 0x4, scoped, tag = 'scoped memory for tpu_custom_call.1']
    #allocation5 [shape = 'u8[32768]{0}', space=vmem, size = 0x8000, scoped, tag = 'input window, operand 3, single buffered']
    #allocation6 [shape = 's32[1]{0}', space=sflag, size = 0x4, scoped, tag = 'scoped memory for tpu_custom_call.1']
    #allocation7 [shape = 'u8[32768]{0}', space=vmem, size = 0x8000, scoped, tag = 'input window, operand 5, single buffered']
    #allocation8 [shape = 'u8[131072]{0}', space=vmem, size = 0x20000, scoped, tag = 'output window, operand 0, single buffered']
    %12 = vsyncpa [#allocation3], 0
    %13 = vsyncpa [#allocation6], 0
    %14 = vsyncpa [#allocation4], 0
    // Predicated region
    $region2: #{tpu_custom_call.1} parent=1 // pred_check
      _
    $region3: #{tpu_custom_call.1} parent=1 // pred_check_branch
      %16 = sbr.rel (0) target = $region5
    $region4: #{tpu_custom_call.1} parent=1 // pred_region
      _
    $region5: #{tpu_custom_call.1} parent=1 // pred_fallthru
      _
    // Predicated region
    $region6: #{tpu_custom_call.1} parent=1 // pred_check
      _
    $region7: #{tpu_custom_call.1} parent=1 // pred_check_branch
      %18 = sbr.rel (0) target = $region9
    $region8: #{tpu_custom_call.1} parent=1 // pred_region
      _
    $region9: #{tpu_custom_call.1} parent=1 // pred_fallthru
      _
    // Predicated region
    $region10: #{tpu_custom_call.1} parent=1 // pred_check
      _
    $region11: #{tpu_custom_call.1} parent=1 // pred_check_branch
      %20 = sbr.rel (0) target = $region13
    $region12: #{tpu_custom_call.1} parent=1 // pred_region
      %22 = vsyncadd [#allocation3], 0
      %s23 = sshll.u32 %s2, 4
      %s24 = int_to_ptr.hbm [resolvable:$true] %s23
      %s25 = sshll.u32 [#allocation2], 4
      %s26 = int_to_ptr.vmem [resolvable:$true] %s25
      %31 = dma.hbm_to_vmem [thread:$0]  %s24, 2048, %s26, [#allocation3], 64, 64, 4
    $region13: #{tpu_custom_call.1} parent=1 // pred_fallthru
      _
    // Predicated region
    $region14: #{tpu_custom_call.1} parent=1 // pred_check
      _
    $region15: #{tpu_custom_call.1} parent=1 // pred_check_branch
      %33 = sbr.rel (0) target = $region17
    $region16: #{tpu_custom_call.1} parent=1 // pred_region
      %35 = vsyncadd [#allocation6], 0
      %s36 = sshll.u32 %s3, 4
      %s37 = int_to_ptr.hbm [resolvable:$true] %s36
      %s38 = sshll.u32 [#allocation5], 4
      %s39 = int_to_ptr.vmem [resolvable:$true] %s38
      %44 = dma.hbm_to_vmem [thread:$0]  %s37, 1024, %s39, [#allocation6], 64, 64, 4
    $region17: #{tpu_custom_call.1} parent=1 // pred_fallthru
      _
    // Predicated region
    $region18: #{tpu_custom_call.1} parent=1 // pred_check
      _
    $region19: #{tpu_custom_call.1} parent=1 // pred_check_branch
      %46 = sbr.rel (0) target = $region21
    $region20: #{tpu_custom_call.1} parent=1 // pred_region
      _
    $region21: #{tpu_custom_call.1} parent=1 // pred_fallthru
      _
    // Predicated region
    $region22: #{tpu_custom_call.1} parent=1 // pred_check
      _
    $region23: #{tpu_custom_call.1} parent=1 // pred_check_branch
      %48 = sbr.rel (0) target = $region25
    $region24: #{tpu_custom_call.1} parent=1 // pred_region
      %50 = vsyncadd [#allocation6], 0
      %s51 = sshll.u32 %s5, 4
      %s52 = int_to_ptr.hbm [resolvable:$true] %s51
      %s53 = sshll.u32 [#allocation7], 4
      %s54 = int_to_ptr.vmem [resolvable:$true] %s53
      %59 = dma.hbm_to_vmem [thread:$0]  %s52, 1024, %s54, [#allocation6], 64, 64, 4
    $region25: #{tpu_custom_call.1} parent=1 // pred_fallthru
      _
    // Predicated region
    $region26: #{tpu_custom_call.1} parent=1 // pred_check
      _
    $region27: #{tpu_custom_call.1} parent=1 // pred_check_branch
      %61 = sbr.rel (0) target = $region29
    $region28: #{tpu_custom_call.1} parent=1 // pred_region
      _
    $region29: #{tpu_custom_call.1} parent=1 // pred_fallthru
      _
    // Predicated region
    $region30: #{tpu_custom_call.1} parent=1 // pred_check
      _
    $region31: #{tpu_custom_call.1} parent=1 // pred_check_branch
      %63 = sbr.rel (0) target = $region33
    $region32: #{tpu_custom_call.1} parent=1 // pred_region
      %65 = dma.done [#allocation3], 2048
    $region33: #{tpu_custom_call.1} parent=1 // pred_fallthru
      _
    // Predicated region
    $region34: #{tpu_custom_call.1} parent=1 // pred_check
      _
    $region35: #{tpu_custom_call.1} parent=1 // pred_check_branch
      %67 = sbr.rel (0) target = $region37
    $region36: #{tpu_custom_call.1} parent=1 // pred_region
      %69 = dma.done [#allocation6], 1024
    $region37: #{tpu_custom_call.1} parent=1 // pred_fallthru
      _
    // Predicated region
    $region38: #{tpu_custom_call.1} parent=1 // pred_check
      _
    $region39: #{tpu_custom_call.1} parent=1 // pred_check_branch
      %71 = sbr.rel (0) target = $region41
    $region40: #{tpu_custom_call.1} parent=1 // pred_region
      %73 = dma.done [#allocation6], 1024
    $region41: #{tpu_custom_call.1} parent=1 // pred_fallthru
      _
    %v74 = vld [vmem:[%s0] sm:$0xff]
    %v75 = vld [vmem:[%s0 + $0x8] sm:$0xff]
    %v76 = vld [vmem:[%s0 + $0x10] sm:$0xff]
    %v77 = vld [vmem:[%s0 + $0x18] sm:$0xff]
    %v78 = vld [vmem:[%s0 + $0x20] sm:$0xff]
    %v79 = vld [vmem:[%s0 + $0x28] sm:$0xff]
    %v80 = vld [vmem:[%s0 + $0x30] sm:$0xff]
    %v81 = vld [vmem:[%s0 + $0x38] sm:$0xff]
    %v82 = vld [vmem:[%s0 + $0x40] sm:$0xff]
    %v83 = vld [vmem:[%s0 + $0x48] sm:$0xff]
    %v84 = vld [vmem:[%s0 + $0x50] sm:$0xff]
    %v85 = vld [vmem:[%s0 + $0x58] sm:$0xff]
    %v86 = vld [vmem:[%s0 + $0x60] sm:$0xff]
    %v87 = vld [vmem:[%s0 + $0x68] sm:$0xff]
    %v88 = vld [vmem:[%s0 + $0x70] sm:$0xff]
    %v89 = vld [vmem:[%s0 + $0x78] sm:$0xff]
    %v90 = vld [vmem:[%s0 + $0x80] sm:$0xff]
    %v91 = vld [vmem:[%s0 + $0x88] sm:$0xff]
    %v92 = vld [vmem:[%s0 + $0x90] sm:$0xff]
    %v93 = vld [vmem:[%s0 + $0x98] sm:$0xff]
    %v94 = vld [vmem:[%s0 + $0xa0] sm:$0xff]
    %v95 = vld [vmem:[%s0 + $0xa8] sm:$0xff]
    %v96 = vld [vmem:[%s0 + $0xb0] sm:$0xff]
    %v97 = vld [vmem:[%s0 + $0xb8] sm:$0xff]
    %v98 = vld [vmem:[%s0 + $0xc0] sm:$0xff]
    %v99 = vld [vmem:[%s0 + $0xc8] sm:$0xff]
    %v100 = vld [vmem:[%s0 + $0xd0] sm:$0xff]
    %v101 = vld [vmem:[%s0 + $0xd8] sm:$0xff]
    %v102 = vld [vmem:[%s0 + $0xe0] sm:$0xff]
    %v103 = vld [vmem:[%s0 + $0xe8] sm:$0xff]
    %v104 = vld [vmem:[%s0 + $0xf0] sm:$0xff]
    %v105 = vld [vmem:[%s0 + $0xf8] sm:$0xff]
    %v106 = vld [vmem:[%s1] sm:$0xff]
    %v107 = vld [vmem:[%s1 + $0x8] sm:$0xff]
    %v108 = vld [vmem:[%s1 + $0x10] sm:$0xff]
    %v109 = vld [vmem:[%s1 + $0x18] sm:$0xff]
    %v110 = vld [vmem:[%s1 + $0x20] sm:$0xff]
    %v111 = vld [vmem:[%s1 + $0x28] sm:$0xff]
    %v112 = vld [vmem:[%s1 + $0x30] sm:$0xff]
    %v113 = vld [vmem:[%s1 + $0x38] sm:$0xff]
    %v114 = vld [vmem:[%s1 + $0x40] sm:$0xff]
    %v115 = vld [vmem:[%s1 + $0x48] sm:$0xff]
    %v116 = vld [vmem:[%s1 + $0x50] sm:$0xff]
    %v117 = vld [vmem:[%s1 + $0x58] sm:$0xff]
    %v118 = vld [vmem:[%s1 + $0x60] sm:$0xff]
    %v119 = vld [vmem:[%s1 + $0x68] sm:$0xff]
    %v120 = vld [vmem:[%s1 + $0x70] sm:$0xff]
    %v121 = vld [vmem:[%s1 + $0x78] sm:$0xff]
    %v122 = vld [vmem:[%s1 + $0x80] sm:$0xff]
    %v123 = vld [vmem:[%s1 + $0x88] sm:$0xff]
    %v124 = vld [vmem:[%s1 + $0x90] sm:$0xff]
    %v125 = vld [vmem:[%s1 + $0x98] sm:$0xff]
    %v126 = vld [vmem:[%s1 + $0xa0] sm:$0xff]
    %v127 = vld [vmem:[%s1 + $0xa8] sm:$0xff]
    %v128 = vld [vmem:[%s1 + $0xb0] sm:$0xff]
    %v129 = vld [vmem:[%s1 + $0xb8] sm:$0xff]
    %v130 = vld [vmem:[%s1 + $0xc0] sm:$0xff]
    %v131 = vld [vmem:[%s1 + $0xc8] sm:$0xff]
    %v132 = vld [vmem:[%s1 + $0xd0] sm:$0xff]
    %v133 = vld [vmem:[%s1 + $0xd8] sm:$0xff]
    %v134 = vld [vmem:[%s1 + $0xe0] sm:$0xff]
    %v135 = vld [vmem:[%s1 + $0xe8] sm:$0xff]
    %v136 = vld [vmem:[%s1 + $0xf0] sm:$0xff]
    %v137 = vld [vmem:[%s1 + $0xf8] sm:$0xff]
    %v138 = vld [vmem:[#allocation2] sm:$0xf]
    %v139 = vld [vmem:[#allocation2 + $0x4] sm:$0xf]
    %v140 = vld [vmem:[#allocation2 + $0x8] sm:$0xf]
    %v141 = vld [vmem:[#allocation2 + $0xc] sm:$0xf]
    %v142 = vld [vmem:[#allocation2 + $0x10] sm:$0xf]
    %v143 = vld [vmem:[#allocation2 + $0x14] sm:$0xf]
    %v144 = vld [vmem:[#allocation2 + $0x18] sm:$0xf]
    %v145 = vld [vmem:[#allocation2 + $0x1c] sm:$0xf]
    %v146 = vld [vmem:[#allocation2 + $0x20] sm:$0xf]
    %v147 = vld [vmem:[#allocation2 + $0x24] sm:$0xf]
    %v148 = vld [vmem:[#allocation2 + $0x28] sm:$0xf]
    %v149 = vld [vmem:[#allocation2 + $0x2c] sm:$0xf]
    %v150 = vld [vmem:[#allocation2 + $0x30] sm:$0xf]
    %v151 = vld [vmem:[#allocation2 + $0x34] sm:$0xf]
    %v152 = vld [vmem:[#allocation2 + $0x38] sm:$0xf]
    %v153 = vld [vmem:[#allocation2 + $0x3c] sm:$0xf]
    %v154 = vld [vmem:[#allocation2 + $0x40] sm:$0xf]
    %v155 = vld [vmem:[#allocation2 + $0x44] sm:$0xf]
    %v156 = vld [vmem:[#allocation2 + $0x48] sm:$0xf]
    %v157 = vld [vmem:[#allocation2 + $0x4c] sm:$0xf]
    %v158 = vld [vmem:[#allocation2 + $0x50] sm:$0xf]
    %v159 = vld [vmem:[#allocation2 + $0x54] sm:$0xf]
    %v160 = vld [vmem:[#allocation2 + $0x58] sm:$0xf]
    %v161 = vld [vmem:[#allocation2 + $0x5c] sm:$0xf]
    %v162 = vld [vmem:[#allocation2 + $0x60] sm:$0xf]
    %v163 = vld [vmem:[#allocation2 + $0x64] sm:$0xf]
    %v164 = vld [vmem:[#allocation2 + $0x68] sm:$0xf]
    %v165 = vld [vmem:[#allocation2 + $0x6c] sm:$0xf]
    %v166 = vld [vmem:[#allocation2 + $0x70] sm:$0xf]
    %v167 = vld [vmem:[#allocation2 + $0x74] sm:$0xf]
    %v168 = vld [vmem:[#allocation2 + $0x78] sm:$0xf]
    %v169 = vld [vmem:[#allocation2 + $0x7c] sm:$0xf]
    %v170 = vunpack.c.l.bf16 %v138
    %v171 = vunpack.c.l.bf16 %v139
    %v172 = vunpack.c.l.bf16 %v140
    %v173 = vunpack.c.l.bf16 %v141
    %v174 = vunpack.c.l.bf16 %v142
    %v175 = vunpack.c.l.bf16 %v143
    %v176 = vunpack.c.l.bf16 %v144
    %v177 = vunpack.c.l.bf16 %v145
    %v178 = vunpack.c.l.bf16 %v146
    %v179 = vunpack.c.l.bf16 %v147
    %v180 = vunpack.c.l.bf16 %v148
    %v181 = vunpack.c.l.bf16 %v149
    %v182 = vunpack.c.l.bf16 %v150
    %v183 = vunpack.c.l.bf16 %v151
    %v184 = vunpack.c.l.bf16 %v152
    %v185 = vunpack.c.l.bf16 %v153
    %v186 = vunpack.c.l.bf16 %v154
    %v187 = vunpack.c.l.bf16 %v155
    %v188 = vunpack.c.l.bf16 %v156
    %v189 = vunpack.c.l.bf16 %v157
    %v190 = vunpack.c.l.bf16 %v158
    %v191 = vunpack.c.l.bf16 %v159
    %v192 = vunpack.c.l.bf16 %v160
    %v193 = vunpack.c.l.bf16 %v161
    %v194 = vunpack.c.l.bf16 %v162
    %v195 = vunpack.c.l.bf16 %v163
    %v196 = vunpack.c.l.bf16 %v164
    %v197 = vunpack.c.l.bf16 %v165
    %v198 = vunpack.c.l.bf16 %v166
    %v199 = vunpack.c.l.bf16 %v167
    %v200 = vunpack.c.l.bf16 %v168
    %v201 = vunpack.c.l.bf16 %v169
    %v202 = vmul.f32 %v106, %v106
    %v203 = vmul.f32 %v107, %v107
    %v204 = vmul.f32 %v108, %v108
    %v205 = vmul.f32 %v109, %v109
    %v206 = vmul.f32 %v110, %v110
    %v207 = vmul.f32 %v111, %v111
    %v208 = vmul.f32 %v112, %v112
    %v209 = vmul.f32 %v113, %v113
    %v210 = vmul.f32 %v114, %v114
    %v211 = vmul.f32 %v115, %v115
    %v212 = vmul.f32 %v116, %v116
    %v213 = vmul.f32 %v117, %v117
    %v214 = vmul.f32 %v118, %v118
    %v215 = vmul.f32 %v119, %v119
    %v216 = vmul.f32 %v120, %v120
    %v217 = vmul.f32 %v121, %v121
    %v218 = vmul.f32 %v122, %v122
    %v219 = vmul.f32 %v123, %v123
    %v220 = vmul.f32 %v124, %v124
    %v221 = vmul.f32 %v125, %v125
    %v222 = vmul.f32 %v126, %v126
    %v223 = vmul.f32 %v127, %v127
    %v224 = vmul.f32 %v128, %v128
    %v225 = vmul.f32 %v129, %v129
    %v226 = vmul.f32 %v130, %v130
    %v227 = vmul.f32 %v131, %v131
    %v228 = vmul.f32 %v132, %v132
    %v229 = vmul.f32 %v133, %v133
    %v230 = vmul.f32 %v134, %v134
    %v231 = vmul.f32 %v135, %v135
    %v232 = vmul.f32 %v136, %v136
    %v233 = vmul.f32 %v137, %v137
    %v234 = vmul.f32 %v202, 0.9
    %v235 = vmul.f32 %v203, 0.9
    %v236 = vmul.f32 %v204, 0.9
    %v237 = vmul.f32 %v205, 0.9
    %v238 = vmul.f32 %v206, 0.9
    %v239 = vmul.f32 %v207, 0.9
    %v240 = vmul.f32 %v208, 0.9
    %v241 = vmul.f32 %v209, 0.9
    %v242 = vmul.f32 %v210, 0.9
    %v243 = vmul.f32 %v211, 0.9
    %v244 = vmul.f32 %v212, 0.9
    %v245 = vmul.f32 %v213, 0.9
    %v246 = vmul.f32 %v214, 0.9
    %v247 = vmul.f32 %v215, 0.9
    %v248 = vmul.f32 %v216, 0.9
    %v249 = vmul.f32 %v217, 0.9
    %v250 = vmul.f32 %v218, 0.9
    %v251 = vmul.f32 %v219, 0.9
    %v252 = vmul.f32 %v220, 0.9
    %v253 = vmul.f32 %v221, 0.9
    %v254 = vmul.f32 %v222, 0.9
    %v255 = vmul.f32 %v223, 0.9
    %v256 = vmul.f32 %v224, 0.9
    %v257 = vmul.f32 %v225, 0.9
    %v258 = vmul.f32 %v226, 0.9
    %v259 = vmul.f32 %v227, 0.9
    %v260 = vmul.f32 %v228, 0.9
    %v261 = vmul.f32 %v229, 0.9
    %v262 = vmul.f32 %v230, 0.9
    %v263 = vmul.f32 %v231, 0.9
    %v264 = vmul.f32 %v232, 0.9
    %v265 = vmul.f32 %v233, 0.9
    %v266 = vmul.f32 %v106, 0.9
    %v267 = vmul.f32 %v107, 0.9
    %v268 = vmul.f32 %v108, 0.9
    %v269 = vmul.f32 %v109, 0.9
    %v270 = vmul.f32 %v110, 0.9
    %v271 = vmul.f32 %v111, 0.9
    %v272 = vmul.f32 %v112, 0.9
    %v273 = vmul.f32 %v113, 0.9
    %v274 = vmul.f32 %v114, 0.9
    %v275 = vmul.f32 %v115, 0.9
    %v276 = vmul.f32 %v116, 0.9
    %v277 = vmul.f32 %v117, 0.9
    %v278 = vmul.f32 %v118, 0.9
    %v279 = vmul.f32 %v119, 0.9
    %v280 = vmul.f32 %v120, 0.9
    %v281 = vmul.f32 %v121, 0.9
    %v282 = vmul.f32 %v122, 0.9
    %v283 = vmul.f32 %v123, 0.9
    %v284 = vmul.f32 %v124, 0.9
    %v285 = vmul.f32 %v125, 0.9
    %v286 = vmul.f32 %v126, 0.9
    %v287 = vmul.f32 %v127, 0.9
    %v288 = vmul.f32 %v128, 0.9
    %v289 = vmul.f32 %v129, 0.9
    %v290 = vmul.f32 %v130, 0.9
    %v291 = vmul.f32 %v131, 0.9
    %v292 = vmul.f32 %v132, 0.9
    %v293 = vmul.f32 %v133, 0.9
    %v294 = vmul.f32 %v134, 0.9
    %v295 = vmul.f32 %v135, 0.9
    %v296 = vmul.f32 %v136, 0.9
    %v297 = vmul.f32 %v137, 0.9
    %v298 = vmul.f32 %v106, 0.1
    %v299 = vmul.f32 %v107, 0.1
    %v300 = vmul.f32 %v108, 0.1
    %v301 = vmul.f32 %v109, 0.1
    %v302 = vmul.f32 %v110, 0.1
    %v303 = vmul.f32 %v111, 0.1
    %v304 = vmul.f32 %v112, 0.1
    %v305 = vmul.f32 %v113, 0.1
    %v306 = vmul.f32 %v114, 0.1
    %v307 = vmul.f32 %v115, 0.1
    %v308 = vmul.f32 %v116, 0.1
    %v309 = vmul.f32 %v117, 0.1
    %v310 = vmul.f32 %v118, 0.1
    %v311 = vmul.f32 %v119, 0.1
    %v312 = vmul.f32 %v120, 0.1
    %v313 = vmul.f32 %v121, 0.1
    %v314 = vmul.f32 %v122, 0.1
    %v315 = vmul.f32 %v123, 0.1
    %v316 = vmul.f32 %v124, 0.1
    %v317 = vmul.f32 %v125, 0.1
    %v318 = vmul.f32 %v126, 0.1
    %v319 = vmul.f32 %v127, 0.1
    %v320 = vmul.f32 %v128, 0.1
    %v321 = vmul.f32 %v129, 0.1
    %v322 = vmul.f32 %v130, 0.1
    %v323 = vmul.f32 %v131, 0.1
    %v324 = vmul.f32 %v132, 0.1
    %v325 = vmul.f32 %v133, 0.1
    %v326 = vmul.f32 %v134, 0.1
    %v327 = vmul.f32 %v135, 0.1
    %v328 = vmul.f32 %v136, 0.1
    %v329 = vmul.f32 %v137, 0.1
    %331 = vset.pattern.permute.xlu0 0
    %332 = vperm.xlu0 %331, %v298
    %v333 = vpop.permute.xlu0 %332
    %336 = vset.pattern.permute.xlu0 0
    %337 = vperm.xlu0 %336, %v299
    %v338 = vpop.permute.xlu0 %337
    %341 = vset.pattern.permute.xlu0 0
    %342 = vperm.xlu0 %341, %v300
    %v343 = vpop.permute.xlu0 %342
    %346 = vset.pattern.permute.xlu0 0
    %347 = vperm.xlu0 %346, %v301
    %v348 = vpop.permute.xlu0 %347
    %351 = vset.pattern.permute.xlu0 0
    %352 = vperm.xlu0 %351, %v302
    %v353 = vpop.permute.xlu0 %352
    %356 = vset.pattern.permute.xlu0 0
    %357 = vperm.xlu0 %356, %v303
    %v358 = vpop.permute.xlu0 %357
    %361 = vset.pattern.permute.xlu0 0
    %362 = vperm.xlu0 %361, %v304
    %v363 = vpop.permute.xlu0 %362
    %366 = vset.pattern.permute.xlu0 0
    %367 = vperm.xlu0 %366, %v305
    %v368 = vpop.permute.xlu0 %367
    %371 = vset.pattern.permute.xlu0 0
    %372 = vperm.xlu0 %371, %v306
    %v373 = vpop.permute.xlu0 %372
    %376 = vset.pattern.permute.xlu0 0
    %377 = vperm.xlu0 %376, %v307
    %v378 = vpop.permute.xlu0 %377
    %381 = vset.pattern.permute.xlu0 0
    %382 = vperm.xlu0 %381, %v308
    %v383 = vpop.permute.xlu0 %382
    %386 = vset.pattern.permute.xlu0 0
    %387 = vperm.xlu0 %386, %v309
    %v388 = vpop.permute.xlu0 %387
    %391 = vset.pattern.permute.xlu0 0
    %392 = vperm.xlu0 %391, %v310
    %v393 = vpop.permute.xlu0 %392
    %396 = vset.pattern.permute.xlu0 0
    %397 = vperm.xlu0 %396, %v311
    %v398 = vpop.permute.xlu0 %397
    %401 = vset.pattern.permute.xlu0 0
    %402 = vperm.xlu0 %401, %v312
    %v403 = vpop.permute.xlu0 %402
    %406 = vset.pattern.permute.xlu0 0
    %407 = vperm.xlu0 %406, %v313
    %v408 = vpop.permute.xlu0 %407
    %411 = vset.pattern.permute.xlu0 0
    %412 = vperm.xlu0 %411, %v314
    %v413 = vpop.permute.xlu0 %412
    %416 = vset.pattern.permute.xlu0 0
    %417 = vperm.xlu0 %416, %v315
    %v418 = vpop.permute.xlu0 %417
    %421 = vset.pattern.permute.xlu0 0
    %422 = vperm.xlu0 %421, %v316
    %v423 = vpop.permute.xlu0 %422
    %426 = vset.pattern.permute.xlu0 0
    %427 = vperm.xlu0 %426, %v317
    %v428 = vpop.permute.xlu0 %427
    %431 = vset.pattern.permute.xlu0 0
    %432 = vperm.xlu0 %431, %v318
    %v433 = vpop.permute.xlu0 %432
    %436 = vset.pattern.permute.xlu0 0
    %437 = vperm.xlu0 %436, %v319
    %v438 = vpop.permute.xlu0 %437
    %441 = vset.pattern.permute.xlu0 0
    %442 = vperm.xlu0 %441, %v320
    %v443 = vpop.permute.xlu0 %442
    %446 = vset.pattern.permute.xlu0 0
    %447 = vperm.xlu0 %446, %v321
    %v448 = vpop.permute.xlu0 %447
    %451 = vset.pattern.permute.xlu0 0
    %452 = vperm.xlu0 %451, %v322
    %v453 = vpop.permute.xlu0 %452
    %456 = vset.pattern.permute.xlu0 0
    %457 = vperm.xlu0 %456, %v323
    %v458 = vpop.permute.xlu0 %457
    %461 = vset.pattern.permute.xlu0 0
    %462 = vperm.xlu0 %461, %v324
    %v463 = vpop.permute.xlu0 %462
    %466 = vset.pattern.permute.xlu0 0
    %467 = vperm.xlu0 %466, %v325
    %v468 = vpop.permute.xlu0 %467
    %471 = vset.pattern.permute.xlu0 0
    %472 = vperm.xlu0 %471, %v326
    %v473 = vpop.permute.xlu0 %472
    %476 = vset.pattern.permute.xlu0 0
    %477 = vperm.xlu0 %476, %v327
    %v478 = vpop.permute.xlu0 %477
    %481 = vset.pattern.permute.xlu0 0
    %482 = vperm.xlu0 %481, %v328
    %v483 = vpop.permute.xlu0 %482
    %486 = vset.pattern.permute.xlu0 0
    %487 = vperm.xlu0 %486, %v329
    %v488 = vpop.permute.xlu0 %487
    %v490 = vmul.f32 %v333, %v170
    %v491 = vmul.f32 %v338, %v171
    %v492 = vmul.f32 %v343, %v172
    %v493 = vmul.f32 %v348, %v173
    %v494 = vmul.f32 %v353, %v174
    %v495 = vmul.f32 %v358, %v175
    %v496 = vmul.f32 %v363, %v176
    %v497 = vmul.f32 %v368, %v177
    %v498 = vmul.f32 %v373, %v178
    %v499 = vmul.f32 %v378, %v179
    %v500 = vmul.f32 %v383, %v180
    %v501 = vmul.f32 %v388, %v181
    %v502 = vmul.f32 %v393, %v182
    %v503 = vmul.f32 %v398, %v183
    %v504 = vmul.f32 %v403, %v184
    %v505 = vmul.f32 %v408, %v185
    %v506 = vmul.f32 %v413, %v186
    %v507 = vmul.f32 %v418, %v187
    %v508 = vmul.f32 %v423, %v188
    %v509 = vmul.f32 %v428, %v189
    %v510 = vmul.f32 %v433, %v190
    %v511 = vmul.f32 %v438, %v191
    %v512 = vmul.f32 %v443, %v192
    %v513 = vmul.f32 %v448, %v193
    %v514 = vmul.f32 %v453, %v194
    %v515 = vmul.f32 %v458, %v195
    %v516 = vmul.f32 %v463, %v196
    %v517 = vmul.f32 %v468, %v197
    %v518 = vmul.f32 %v473, %v198
    %v519 = vmul.f32 %v478, %v199
    %v520 = vmul.f32 %v483, %v200
    %v521 = vmul.f32 %v488, %v201
    %v522 = vmul.f32 %v170, 0.1
    %v523 = vmul.f32 %v171, 0.1
    %v524 = vmul.f32 %v172, 0.1
    %v525 = vmul.f32 %v173, 0.1
    %v526 = vmul.f32 %v174, 0.1
    %v527 = vmul.f32 %v175, 0.1
    %v528 = vmul.f32 %v176, 0.1
    %v529 = vmul.f32 %v177, 0.1
    %v530 = vmul.f32 %v178, 0.1
    %v531 = vmul.f32 %v179, 0.1
    %v532 = vmul.f32 %v180, 0.1
    %v533 = vmul.f32 %v181, 0.1
    %v534 = vmul.f32 %v182, 0.1
    %v535 = vmul.f32 %v183, 0.1
    %v536 = vmul.f32 %v184, 0.1
    %v537 = vmul.f32 %v185, 0.1
    %v538 = vmul.f32 %v186, 0.1
    %v539 = vmul.f32 %v187, 0.1
    %v540 = vmul.f32 %v188, 0.1
    %v541 = vmul.f32 %v189, 0.1
    %v542 = vmul.f32 %v190, 0.1
    %v543 = vmul.f32 %v191, 0.1
    %v544 = vmul.f32 %v192, 0.1
    %v545 = vmul.f32 %v193, 0.1
    %v546 = vmul.f32 %v194, 0.1
    %v547 = vmul.f32 %v195, 0.1
    %v548 = vmul.f32 %v196, 0.1
    %v549 = vmul.f32 %v197, 0.1
    %v550 = vmul.f32 %v198, 0.1
    %v551 = vmul.f32 %v199, 0.1
    %v552 = vmul.f32 %v200, 0.1
    %v553 = vmul.f32 %v201, 0.1
    %555 = vset.pattern.permute.xlu0 0
    %556 = vperm.xlu0 %555, %v106
    %v557 = vpop.permute.xlu0 %556
    %560 = vset.pattern.permute.xlu0 0
    %561 = vperm.xlu0 %560, %v107
    %v562 = vpop.permute.xlu0 %561
    %565 = vset.pattern.permute.xlu0 0
    %566 = vperm.xlu0 %565, %v108
    %v567 = vpop.permute.xlu0 %566
    %570 = vset.pattern.permute.xlu0 0
    %571 = vperm.xlu0 %570, %v109
    %v572 = vpop.permute.xlu0 %571
    %575 = vset.pattern.permute.xlu0 0
    %576 = vperm.xlu0 %575, %v110
    %v577 = vpop.permute.xlu0 %576
    %580 = vset.pattern.permute.xlu0 0
    %581 = vperm.xlu0 %580, %v111
    %v582 = vpop.permute.xlu0 %581
    %585 = vset.pattern.permute.xlu0 0
    %586 = vperm.xlu0 %585, %v112
    %v587 = vpop.permute.xlu0 %586
    %590 = vset.pattern.permute.xlu0 0
    %591 = vperm.xlu0 %590, %v113
    %v592 = vpop.permute.xlu0 %591
    %595 = vset.pattern.permute.xlu0 0
    %596 = vperm.xlu0 %595, %v114
    %v597 = vpop.permute.xlu0 %596
    %600 = vset.pattern.permute.xlu0 0
    %601 = vperm.xlu0 %600, %v115
    %v602 = vpop.permute.xlu0 %601
    %605 = vset.pattern.permute.xlu0 0
    %606 = vperm.xlu0 %605, %v116
    %v607 = vpop.permute.xlu0 %606
    %610 = vset.pattern.permute.xlu0 0
    %611 = vperm.xlu0 %610, %v117
    %v612 = vpop.permute.xlu0 %611
    %615 = vset.pattern.permute.xlu0 0
    %616 = vperm.xlu0 %615, %v118
    %v617 = vpop.permute.xlu0 %616
    %620 = vset.pattern.permute.xlu0 0
    %621 = vperm.xlu0 %620, %v119
    %v622 = vpop.permute.xlu0 %621
    %625 = vset.pattern.permute.xlu0 0
    %626 = vperm.xlu0 %625, %v120
    %v627 = vpop.permute.xlu0 %626
    %630 = vset.pattern.permute.xlu0 0
    %631 = vperm.xlu0 %630, %v121
    %v632 = vpop.permute.xlu0 %631
    %635 = vset.pattern.permute.xlu0 0
    %636 = vperm.xlu0 %635, %v122
    %v637 = vpop.permute.xlu0 %636
    %640 = vset.pattern.permute.xlu0 0
    %641 = vperm.xlu0 %640, %v123
    %v642 = vpop.permute.xlu0 %641
    %645 = vset.pattern.permute.xlu0 0
    %646 = vperm.xlu0 %645, %v124
    %v647 = vpop.permute.xlu0 %646
    %650 = vset.pattern.permute.xlu0 0
    %651 = vperm.xlu0 %650, %v125
    %v652 = vpop.permute.xlu0 %651
    %655 = vset.pattern.permute.xlu0 0
    %656 = vperm.xlu0 %655, %v126
    %v657 = vpop.permute.xlu0 %656
    %660 = vset.pattern.permute.xlu0 0
    %661 = vperm.xlu0 %660, %v127
    %v662 = vpop.permute.xlu0 %661
    %665 = vset.pattern.permute.xlu0 0
    %666 = vperm.xlu0 %665, %v128
    %v667 = vpop.permute.xlu0 %666
    %670 = vset.pattern.permute.xlu0 0
    %671 = vperm.xlu0 %670, %v129
    %v672 = vpop.permute.xlu0 %671
    %675 = vset.pattern.permute.xlu0 0
    %676 = vperm.xlu0 %675, %v130
    %v677 = vpop.permute.xlu0 %676
    %680 = vset.pattern.permute.xlu0 0
    %681 = vperm.xlu0 %680, %v131
    %v682 = vpop.permute.xlu0 %681
    %685 = vset.pattern.permute.xlu0 0
    %686 = vperm.xlu0 %685, %v132
    %v687 = vpop.permute.xlu0 %686
    %690 = vset.pattern.permute.xlu0 0
    %691 = vperm.xlu0 %690, %v133
    %v692 = vpop.permute.xlu0 %691
    %695 = vset.pattern.permute.xlu0 0
    %696 = vperm.xlu0 %695, %v134
    %v697 = vpop.permute.xlu0 %696
    %700 = vset.pattern.permute.xlu0 0
    %701 = vperm.xlu0 %700, %v135
    %v702 = vpop.permute.xlu0 %701
    %705 = vset.pattern.permute.xlu0 0
    %706 = vperm.xlu0 %705, %v136
    %v707 = vpop.permute.xlu0 %706
    %710 = vset.pattern.permute.xlu0 0
    %711 = vperm.xlu0 %710, %v137
    %v712 = vpop.permute.xlu0 %711
    %v714 = vmul.f32 %v557, %v170
    %v715 = vmul.f32 %v562, %v171
    %v716 = vmul.f32 %v567, %v172
    %v717 = vmul.f32 %v572, %v173
    %v718 = vmul.f32 %v577, %v174
    %v719 = vmul.f32 %v582, %v175
    %v720 = vmul.f32 %v587, %v176
    %v721 = vmul.f32 %v592, %v177
    %v722 = vmul.f32 %v597, %v178
    %v723 = vmul.f32 %v602, %v179
    %v724 = vmul.f32 %v607, %v180
    %v725 = vmul.f32 %v612, %v181
    %v726 = vmul.f32 %v617, %v182
    %v727 = vmul.f32 %v622, %v183
    %v728 = vmul.f32 %v627, %v184
    %v729 = vmul.f32 %v632, %v185
    %v730 = vmul.f32 %v637, %v186
    %v731 = vmul.f32 %v642, %v187
    %v732 = vmul.f32 %v647, %v188
    %v733 = vmul.f32 %v652, %v189
    %v734 = vmul.f32 %v657, %v190
    %v735 = vmul.f32 %v662, %v191
    %v736 = vmul.f32 %v667, %v192
    %v737 = vmul.f32 %v672, %v193
    %v738 = vmul.f32 %v677, %v194
    %v739 = vmul.f32 %v682, %v195
    %v740 = vmul.f32 %v687, %v196
    %v741 = vmul.f32 %v692, %v197
    %v742 = vmul.f32 %v697, %v198
    %v743 = vmul.f32 %v702, %v199
    %v744 = vmul.f32 %v707, %v200
    %v745 = vmul.f32 %v712, %v201
    %v746 = vpack.c.bf16 %v715, %v714
    %v747 = vpack.c.bf16 %v717, %v716
    %v748 = vpack.c.bf16 %v719, %v718
    %v749 = vpack.c.bf16 %v721, %v720
    %v750 = vpack.c.bf16 %v723, %v722
    %v751 = vpack.c.bf16 %v725, %v724
    %v752 = vpack.c.bf16 %v727, %v726
    %v753 = vpack.c.bf16 %v729, %v728
    %v754 = vpack.c.bf16 %v731, %v730
    %v755 = vpack.c.bf16 %v733, %v732
    %v756 = vpack.c.bf16 %v735, %v734
    %v757 = vpack.c.bf16 %v737, %v736
    %v758 = vpack.c.bf16 %v739, %v738
    %v759 = vpack.c.bf16 %v741, %v740
    %v760 = vpack.c.bf16 %v743, %v742
    %v761 = vpack.c.bf16 %v745, %v744
    %v762 = vunpack.c.l.bf16 %v746
    %v763 = vunpack.c.h.bf16 %v746
    %v764 = vunpack.c.l.bf16 %v747
    %v765 = vunpack.c.h.bf16 %v747
    %v766 = vunpack.c.l.bf16 %v748
    %v767 = vunpack.c.h.bf16 %v748
    %v768 = vunpack.c.l.bf16 %v749
    %v769 = vunpack.c.h.bf16 %v749
    %v770 = vunpack.c.l.bf16 %v750
    %v771 = vunpack.c.h.bf16 %v750
    %v772 = vunpack.c.l.bf16 %v751
    %v773 = vunpack.c.h.bf16 %v751
    %v774 = vunpack.c.l.bf16 %v752
    %v775 = vunpack.c.h.bf16 %v752
    %v776 = vunpack.c.l.bf16 %v753
    %v777 = vunpack.c.h.bf16 %v753
    %v778 = vunpack.c.l.bf16 %v754
    %v779 = vunpack.c.h.bf16 %v754
    %v780 = vunpack.c.l.bf16 %v755
    %v781 = vunpack.c.h.bf16 %v755
    %v782 = vunpack.c.l.bf16 %v756
    %v783 = vunpack.c.h.bf16 %v756
    %v784 = vunpack.c.l.bf16 %v757
    %v785 = vunpack.c.h.bf16 %v757
    %v786 = vunpack.c.l.bf16 %v758
    %v787 = vunpack.c.h.bf16 %v758
    %v788 = vunpack.c.l.bf16 %v759
    %v789 = vunpack.c.h.bf16 %v759
    %v790 = vunpack.c.l.bf16 %v760
    %v791 = vunpack.c.h.bf16 %v760
    %v792 = vunpack.c.l.bf16 %v761
    %v793 = vunpack.c.h.bf16 %v761
    %v826 = vunpack.c.l.b16 %v74
    %v827 = vunpack.c.h.b16 %v74
    %v828 = vunpack.c.l.b16 %v75
    %v829 = vunpack.c.h.b16 %v75
    %v830 = vunpack.c.l.b16 %v76
    %v831 = vunpack.c.h.b16 %v76
    %v832 = vunpack.c.l.b16 %v77
    %v833 = vunpack.c.h.b16 %v77
    %v834 = vunpack.c.l.b16 %v78
    %v835 = vunpack.c.h.b16 %v78
    %v836 = vunpack.c.l.b16 %v79
    %v837 = vunpack.c.h.b16 %v79
    %v838 = vunpack.c.l.b16 %v80
    %v839 = vunpack.c.h.b16 %v80
    %v840 = vunpack.c.l.b16 %v81
    %v841 = vunpack.c.h.b16 %v81
    %v842 = vunpack.c.l.b16 %v82
    %v843 = vunpack.c.h.b16 %v82
    %v844 = vunpack.c.l.b16 %v83
    %v845 = vunpack.c.h.b16 %v83
    %v846 = vunpack.c.l.b16 %v84
    %v847 = vunpack.c.h.b16 %v84
    %v848 = vunpack.c.l.b16 %v85
    %v849 = vunpack.c.h.b16 %v85
    %v850 = vunpack.c.l.b16 %v86
    %v851 = vunpack.c.h.b16 %v86
    %v852 = vunpack.c.l.b16 %v87
    %v853 = vunpack.c.h.b16 %v87
    %v854 = vunpack.c.l.b16 %v88
    %v855 = vunpack.c.h.b16 %v88
    %v856 = vunpack.c.l.b16 %v89
    %v857 = vunpack.c.h.b16 %v89
    %v858 = vunpack.c.l.b16 %v90
    %v859 = vunpack.c.h.b16 %v90
    %v860 = vunpack.c.l.b16 %v91
    %v861 = vunpack.c.h.b16 %v91
    %v862 = vunpack.c.l.b16 %v92
    %v863 = vunpack.c.h.b16 %v92
    %v864 = vunpack.c.l.b16 %v93
    %v865 = vunpack.c.h.b16 %v93
    %v866 = vunpack.c.l.b16 %v94
    %v867 = vunpack.c.h.b16 %v94
    %v868 = vunpack.c.l.b16 %v95
    %v869 = vunpack.c.h.b16 %v95
    %v870 = vunpack.c.l.b16 %v96
    %v871 = vunpack.c.h.b16 %v96
    %v872 = vunpack.c.l.b16 %v97
    %v873 = vunpack.c.h.b16 %v97
    %v874 = vunpack.c.l.b16 %v98
    %v875 = vunpack.c.h.b16 %v98
    %v876 = vunpack.c.l.b16 %v99
    %v877 = vunpack.c.h.b16 %v99
    %v878 = vunpack.c.l.b16 %v100
    %v879 = vunpack.c.h.b16 %v100
    %v880 = vunpack.c.l.b16 %v101
    %v881 = vunpack.c.h.b16 %v101
    %v882 = vunpack.c.l.b16 %v102
    %v883 = vunpack.c.h.b16 %v102
    %v884 = vunpack.c.l.b16 %v103
    %v885 = vunpack.c.h.b16 %v103
    %v886 = vunpack.c.l.b16 %v104
    %v887 = vunpack.c.h.b16 %v104
    %v888 = vunpack.c.l.b16 %v105
    %v889 = vunpack.c.h.b16 %v105
    %v890 = vpack.c.b16 %v828, %v826
    %v891 = vpack.c.b16 %v829, %v827
    %v892 = vpack.c.b16 %v832, %v830
    %v893 = vpack.c.b16 %v833, %v831
    %v894 = vpack.c.b16 %v836, %v834
    %v895 = vpack.c.b16 %v837, %v835
    %v896 = vpack.c.b16 %v840, %v838
    %v897 = vpack.c.b16 %v841, %v839
    %v898 = vpack.c.b16 %v844, %v842
    %v899 = vpack.c.b16 %v845, %v843
    %v900 = vpack.c.b16 %v848, %v846
    %v901 = vpack.c.b16 %v849, %v847
    %v902 = vpack.c.b16 %v852, %v850
    %v903 = vpack.c.b16 %v853, %v851
    %v904 = vpack.c.b16 %v856, %v854
    %v905 = vpack.c.b16 %v857, %v855
    %v906 = vpack.c.b16 %v860, %v858
    %v907 = vpack.c.b16 %v861, %v859
    %v908 = vpack.c.b16 %v864, %v862
    %v909 = vpack.c.b16 %v865, %v863
    %v910 = vpack.c.b16 %v868, %v866
    %v911 = vpack.c.b16 %v869, %v867
    %v912 = vpack.c.b16 %v872, %v870
    %v913 = vpack.c.b16 %v873, %v871
    %v914 = vpack.c.b16 %v876, %v874
    %v915 = vpack.c.b16 %v877, %v875
    %v916 = vpack.c.b16 %v880, %v878
    %v917 = vpack.c.b16 %v881, %v879
    %v918 = vpack.c.b16 %v884, %v882
    %v919 = vpack.c.b16 %v885, %v883
    %v920 = vpack.c.b16 %v888, %v886
    %v921 = vpack.c.b16 %v889, %v887
    %954 = vmatpush.bf16.msra.mxu0 %v753
    %955 = vmatpush.bf16.msra.mxu0 %v752
    %956 = vmatpush.bf16.msra.mxu0 %v751
    %957 = vmatpush.bf16.msra.mxu0 %v750
    %958 = vmatpush.bf16.msra.mxu0 %v749
    %959 = vmatpush.bf16.msra.mxu0 %v748
    %960 = vmatpush.bf16.msra.mxu0 %v747
    %961 = vmatpush.bf16.msra.mxu0 %v746
    %962 = vmatmul.bf16.gmra.mxu0 %v890
    %v963 = vpop.f32.mrf.mxu0
    %v964 = vadd.f32 %v762, %v963
    %v965 = vpop.f32.mrf.mxu0
    %v966 = vadd.f32 %v763, %v965
    %967 = vmatmul.bf16.gmra.mxu0 %v892
    %v968 = vpop.f32.mrf.mxu0
    %v969 = vadd.f32 %v764, %v968
    %v970 = vpop.f32.mrf.mxu0
    %v971 = vadd.f32 %v765, %v970
    %972 = vmatmul.bf16.gmra.mxu0 %v894
    %v973 = vpop.f32.mrf.mxu0
    %v974 = vadd.f32 %v766, %v973
    %v975 = vpop.f32.mrf.mxu0
    %v976 = vadd.f32 %v767, %v975
    %977 = vmatmul.bf16.gmra.mxu0 %v896
    %v978 = vpop.f32.mrf.mxu0
    %v979 = vadd.f32 %v768, %v978
    %v980 = vpop.f32.mrf.mxu0
    %v981 = vadd.f32 %v769, %v980
    %982 = vmatmul.bf16.gmra.mxu0 %v898
    %v983 = vpop.f32.mrf.mxu0
    %v984 = vadd.f32 %v770, %v983
    %v985 = vpop.f32.mrf.mxu0
    %v986 = vadd.f32 %v771, %v985
    %987 = vmatmul.bf16.gmra.mxu0 %v900
    %v988 = vpop.f32.mrf.mxu0
    %v989 = vadd.f32 %v772, %v988
    %v990 = vpop.f32.mrf.mxu0
    %v991 = vadd.f32 %v773, %v990
    %992 = vmatmul.bf16.gmra.mxu0 %v902
    %v993 = vpop.f32.mrf.mxu0
    %v994 = vadd.f32 %v774, %v993
    %v995 = vpop.f32.mrf.mxu0
    %v996 = vadd.f32 %v775, %v995
    %997 = vmatmul.bf16.gmra.mxu0 %v904
    %v998 = vpop.f32.mrf.mxu0
    %v999 = vadd.f32 %v776, %v998
    %v1000 = vpop.f32.mrf.mxu0
    %v1001 = vadd.f32 %v777, %v1000
    %1002 = vmatmul.bf16.gmra.mxu0 %v906
    %v1003 = vpop.f32.mrf.mxu0
    %v1004 = vadd.f32 %v778, %v1003
    %v1005 = vpop.f32.mrf.mxu0
    %v1006 = vadd.f32 %v779, %v1005
    %1007 = vmatmul.bf16.gmra.mxu0 %v908
    %v1008 = vpop.f32.mrf.mxu0
    %v1009 = vadd.f32 %v780, %v1008
    %v1010 = vpop.f32.mrf.mxu0
    %v1011 = vadd.f32 %v781, %v1010
    %1012 = vmatmul.bf16.gmra.mxu0 %v910
    %v1013 = vpop.f32.mrf.mxu0
    %v1014 = vadd.f32 %v782, %v1013
    %v1015 = vpop.f32.mrf.mxu0
    %v1016 = vadd.f32 %v783, %v1015
    %1017 = vmatmul.bf16.gmra.mxu0 %v912
    %v1018 = vpop.f32.mrf.mxu0
    %v1019 = vadd.f32 %v784, %v1018
    %v1020 = vpop.f32.mrf.mxu0
    %v1021 = vadd.f32 %v785, %v1020
    %1022 = vmatmul.bf16.gmra.mxu0 %v914
    %v1023 = vpop.f32.mrf.mxu0
    %v1024 = vadd.f32 %v786, %v1023
    %v1025 = vpop.f32.mrf.mxu0
    %v1026 = vadd.f32 %v787, %v1025
    %1027 = vmatmul.bf16.gmra.mxu0 %v916
    %v1028 = vpop.f32.mrf.mxu0
    %v1029 = vadd.f32 %v788, %v1028
    %v1030 = vpop.f32.mrf.mxu0
    %v1031 = vadd.f32 %v789, %v1030
    %1032 = vmatmul.bf16.gmra.mxu0 %v918
    %v1033 = vpop.f32.mrf.mxu0
    %v1034 = vadd.f32 %v790, %v1033
    %v1035 = vpop.f32.mrf.mxu0
    %v1036 = vadd.f32 %v791, %v1035
    %1037 = vmatmul.bf16.gmra.mxu0 %v920
    %v1038 = vpop.f32.mrf.mxu0
    %v1039 = vadd.f32 %v792, %v1038
    %v1040 = vpop.f32.mrf.mxu0
    %v1041 = vadd.f32 %v793, %v1040
    %1042 = vdwg.mxu0
    %1043 = vmatpush.bf16.msra.mxu0 %v761
    %1044 = vmatpush.bf16.msra.mxu0 %v760
    %1045 = vmatpush.bf16.msra.mxu0 %v759
    %1046 = vmatpush.bf16.msra.mxu0 %v758
    %1047 = vmatpush.bf16.msra.mxu0 %v757
    %1048 = vmatpush.bf16.msra.mxu0 %v756
    %1049 = vmatpush.bf16.msra.mxu0 %v755
    %1050 = vmatpush.bf16.msra.mxu0 %v754
    %1051 = vmatmul.bf16.gmra.mxu0 %v891
    %v1052 = vpop.f32.mrf.mxu0
    %v1053 = vadd.f32 %v964, %v1052
    %v1054 = vpop.f32.mrf.mxu0
    %v1055 = vadd.f32 %v966, %v1054
    %1056 = vmatmul.bf16.gmra.mxu0 %v893
    %v1057 = vpop.f32.mrf.mxu0
    %v1058 = vadd.f32 %v969, %v1057
    %v1059 = vpop.f32.mrf.mxu0
    %v1060 = vadd.f32 %v971, %v1059
    %1061 = vmatmul.bf16.gmra.mxu0 %v895
    %v1062 = vpop.f32.mrf.mxu0
    %v1063 = vadd.f32 %v974, %v1062
    %v1064 = vpop.f32.mrf.mxu0
    %v1065 = vadd.f32 %v976, %v1064
    %1066 = vmatmul.bf16.gmra.mxu0 %v897
    %v1067 = vpop.f32.mrf.mxu0
    %v1068 = vadd.f32 %v979, %v1067
    %v1069 = vpop.f32.mrf.mxu0
    %v1070 = vadd.f32 %v981, %v1069
    %1071 = vmatmul.bf16.gmra.mxu0 %v899
    %v1072 = vpop.f32.mrf.mxu0
    %v1073 = vadd.f32 %v984, %v1072
    %v1074 = vpop.f32.mrf.mxu0
    %v1075 = vadd.f32 %v986, %v1074
    %1076 = vmatmul.bf16.gmra.mxu0 %v901
    %v1077 = vpop.f32.mrf.mxu0
    %v1078 = vadd.f32 %v989, %v1077
    %v1079 = vpop.f32.mrf.mxu0
    %v1080 = vadd.f32 %v991, %v1079
    %1081 = vmatmul.bf16.gmra.mxu0 %v903
    %v1082 = vpop.f32.mrf.mxu0
    %v1083 = vadd.f32 %v994, %v1082
    %v1084 = vpop.f32.mrf.mxu0
    %v1085 = vadd.f32 %v996, %v1084
    %1086 = vmatmul.bf16.gmra.mxu0 %v905
    %v1087 = vpop.f32.mrf.mxu0
    %v1088 = vadd.f32 %v999, %v1087
    %v1089 = vpop.f32.mrf.mxu0
    %v1090 = vadd.f32 %v1001, %v1089
    %1091 = vmatmul.bf16.gmra.mxu0 %v907
    %v1092 = vpop.f32.mrf.mxu0
    %v1093 = vadd.f32 %v1004, %v1092
    %v1094 = vpop.f32.mrf.mxu0
    %v1095 = vadd.f32 %v1006, %v1094
    %1096 = vmatmul.bf16.gmra.mxu0 %v909
    %v1097 = vpop.f32.mrf.mxu0
    %v1098 = vadd.f32 %v1009, %v1097
    %v1099 = vpop.f32.mrf.mxu0
    %v1100 = vadd.f32 %v1011, %v1099
    %1101 = vmatmul.bf16.gmra.mxu0 %v911
    %v1102 = vpop.f32.mrf.mxu0
    %v1103 = vadd.f32 %v1014, %v1102
    %v1104 = vpop.f32.mrf.mxu0
    %v1105 = vadd.f32 %v1016, %v1104
    %1106 = vmatmul.bf16.gmra.mxu0 %v913
    %v1107 = vpop.f32.mrf.mxu0
    %v1108 = vadd.f32 %v1019, %v1107
    %v1109 = vpop.f32.mrf.mxu0
    %v1110 = vadd.f32 %v1021, %v1109
    %1111 = vmatmul.bf16.gmra.mxu0 %v915
    %v1112 = vpop.f32.mrf.mxu0
    %v1113 = vadd.f32 %v1024, %v1112
    %v1114 = vpop.f32.mrf.mxu0
    %v1115 = vadd.f32 %v1026, %v1114
    %1116 = vmatmul.bf16.gmra.mxu0 %v917
    %v1117 = vpop.f32.mrf.mxu0
    %v1118 = vadd.f32 %v1029, %v1117
    %v1119 = vpop.f32.mrf.mxu0
    %v1120 = vadd.f32 %v1031, %v1119
    %1121 = vmatmul.bf16.gmra.mxu0 %v919
    %v1122 = vpop.f32.mrf.mxu0
    %v1123 = vadd.f32 %v1034, %v1122
    %v1124 = vpop.f32.mrf.mxu0
    %v1125 = vadd.f32 %v1036, %v1124
    %1126 = vmatmul.bf16.gmra.mxu0 %v921
    %v1127 = vpop.f32.mrf.mxu0
    %v1128 = vadd.f32 %v1039, %v1127
    %v1129 = vpop.f32.mrf.mxu0
    %v1130 = vadd.f32 %v1041, %v1129
    %1131 = vdwg.mxu0
    %1133 = vset.pattern.permute.xlu0 0
    %1134 = vperm.xlu0 %1133, %v234
    %v1135 = vpop.permute.xlu0 %1134
    %1138 = vset.pattern.permute.xlu0 0
    %1139 = vperm.xlu0 %1138, %v235
    %v1140 = vpop.permute.xlu0 %1139
    %1143 = vset.pattern.permute.xlu0 0
    %1144 = vperm.xlu0 %1143, %v236
    %v1145 = vpop.permute.xlu0 %1144
    %1148 = vset.pattern.permute.xlu0 0
    %1149 = vperm.xlu0 %1148, %v237
    %v1150 = vpop.permute.xlu0 %1149
    %1153 = vset.pattern.permute.xlu0 0
    %1154 = vperm.xlu0 %1153, %v238
    %v1155 = vpop.permute.xlu0 %1154
    %1158 = vset.pattern.permute.xlu0 0
    %1159 = vperm.xlu0 %1158, %v239
    %v1160 = vpop.permute.xlu0 %1159
    %1163 = vset.pattern.permute.xlu0 0
    %1164 = vperm.xlu0 %1163, %v240
    %v1165 = vpop.permute.xlu0 %1164
    %1168 = vset.pattern.permute.xlu0 0
    %1169 = vperm.xlu0 %1168, %v241
    %v1170 = vpop.permute.xlu0 %1169
    %1173 = vset.pattern.permute.xlu0 0
    %1174 = vperm.xlu0 %1173, %v242
    %v1175 = vpop.permute.xlu0 %1174
    %1178 = vset.pattern.permute.xlu0 0
    %1179 = vperm.xlu0 %1178, %v243
    %v1180 = vpop.permute.xlu0 %1179
    %1183 = vset.pattern.permute.xlu0 0
    %1184 = vperm.xlu0 %1183, %v244
    %v1185 = vpop.permute.xlu0 %1184
    %1188 = vset.pattern.permute.xlu0 0
    %1189 = vperm.xlu0 %1188, %v245
    %v1190 = vpop.permute.xlu0 %1189
    %1193 = vset.pattern.permute.xlu0 0
    %1194 = vperm.xlu0 %1193, %v246
    %v1195 = vpop.permute.xlu0 %1194
    %1198 = vset.pattern.permute.xlu0 0
    %1199 = vperm.xlu0 %1198, %v247
    %v1200 = vpop.permute.xlu0 %1199
    %1203 = vset.pattern.permute.xlu0 0
    %1204 = vperm.xlu0 %1203, %v248
    %v1205 = vpop.permute.xlu0 %1204
    %1208 = vset.pattern.permute.xlu0 0
    %1209 = vperm.xlu0 %1208, %v249
    %v1210 = vpop.permute.xlu0 %1209
    %1213 = vset.pattern.permute.xlu0 0
    %1214 = vperm.xlu0 %1213, %v250
    %v1215 = vpop.permute.xlu0 %1214
    %1218 = vset.pattern.permute.xlu0 0
    %1219 = vperm.xlu0 %1218, %v251
    %v1220 = vpop.permute.xlu0 %1219
    %1223 = vset.pattern.permute.xlu0 0
    %1224 = vperm.xlu0 %1223, %v252
    %v1225 = vpop.permute.xlu0 %1224
    %1228 = vset.pattern.permute.xlu0 0
    %1229 = vperm.xlu0 %1228, %v253
    %v1230 = vpop.permute.xlu0 %1229
    %1233 = vset.pattern.permute.xlu0 0
    %1234 = vperm.xlu0 %1233, %v254
    %v1235 = vpop.permute.xlu0 %1234
    %1238 = vset.pattern.permute.xlu0 0
    %1239 = vperm.xlu0 %1238, %v255
    %v1240 = vpop.permute.xlu0 %1239
    %1243 = vset.pattern.permute.xlu0 0
    %1244 = vperm.xlu0 %1243, %v256
    %v1245 = vpop.permute.xlu0 %1244
    %1248 = vset.pattern.permute.xlu0 0
    %1249 = vperm.xlu0 %1248, %v257
    %v1250 = vpop.permute.xlu0 %1249
    %1253 = vset.pattern.permute.xlu0 0
    %1254 = vperm.xlu0 %1253, %v258
    %v1255 = vpop.permute.xlu0 %1254
    %1258 = vset.pattern.permute.xlu0 0
    %1259 = vperm.xlu0 %1258, %v259
    %v1260 = vpop.permute.xlu0 %1259
    %1263 = vset.pattern.permute.xlu0 0
    %1264 = vperm.xlu0 %1263, %v260
    %v1265 = vpop.permute.xlu0 %1264
    %1268 = vset.pattern.permute.xlu0 0
    %1269 = vperm.xlu0 %1268, %v261
    %v1270 = vpop.permute.xlu0 %1269
    %1273 = vset.pattern.permute.xlu0 0
    %1274 = vperm.xlu0 %1273, %v262
    %v1275 = vpop.permute.xlu0 %1274
    %1278 = vset.pattern.permute.xlu0 0
    %1279 = vperm.xlu0 %1278, %v263
    %v1280 = vpop.permute.xlu0 %1279
    %1283 = vset.pattern.permute.xlu0 0
    %1284 = vperm.xlu0 %1283, %v264
    %v1285 = vpop.permute.xlu0 %1284
    %1288 = vset.pattern.permute.xlu0 0
    %1289 = vperm.xlu0 %1288, %v265
    %v1290 = vpop.permute.xlu0 %1289
    %v1292 = vmul.f32 %v1135, %v1053
    %v1293 = vmul.f32 %v1140, %v1055
    %v1294 = vmul.f32 %v1145, %v1058
    %v1295 = vmul.f32 %v1150, %v1060
    %v1296 = vmul.f32 %v1155, %v1063
    %v1297 = vmul.f32 %v1160, %v1065
    %v1298 = vmul.f32 %v1165, %v1068
    %v1299 = vmul.f32 %v1170, %v1070
    %v1300 = vmul.f32 %v1175, %v1073
    %v1301 = vmul.f32 %v1180, %v1075
    %v1302 = vmul.f32 %v1185, %v1078
    %v1303 = vmul.f32 %v1190, %v1080
    %v1304 = vmul.f32 %v1195, %v1083
    %v1305 = vmul.f32 %v1200, %v1085
    %v1306 = vmul.f32 %v1205, %v1088
    %v1307 = vmul.f32 %v1210, %v1090
    %v1308 = vmul.f32 %v1215, %v1093
    %v1309 = vmul.f32 %v1220, %v1095
    %v1310 = vmul.f32 %v1225, %v1098
    %v1311 = vmul.f32 %v1230, %v1100
    %v1312 = vmul.f32 %v1235, %v1103
    %v1313 = vmul.f32 %v1240, %v1105
    %v1314 = vmul.f32 %v1245, %v1108
    %v1315 = vmul.f32 %v1250, %v1110
    %v1316 = vmul.f32 %v1255, %v1113
    %v1317 = vmul.f32 %v1260, %v1115
    %v1318 = vmul.f32 %v1265, %v1118
    %v1319 = vmul.f32 %v1270, %v1120
    %v1320 = vmul.f32 %v1275, %v1123
    %v1321 = vmul.f32 %v1280, %v1125
    %v1322 = vmul.f32 %v1285, %v1128
    %v1323 = vmul.f32 %v1290, %v1130
    %v1324 = vadd.f32 %v1292, %v490
    %v1325 = vadd.f32 %v1293, %v491
    %v1326 = vadd.f32 %v1294, %v492
    %v1327 = vadd.f32 %v1295, %v493
    %v1328 = vadd.f32 %v1296, %v494
    %v1329 = vadd.f32 %v1297, %v495
    %v1330 = vadd.f32 %v1298, %v496
    %v1331 = vadd.f32 %v1299, %v497
    %v1332 = vadd.f32 %v1300, %v498
    %v1333 = vadd.f32 %v1301, %v499
    %v1334 = vadd.f32 %v1302, %v500
    %v1335 = vadd.f32 %v1303, %v501
    %v1336 = vadd.f32 %v1304, %v502
    %v1337 = vadd.f32 %v1305, %v503
    %v1338 = vadd.f32 %v1306, %v504
    %v1339 = vadd.f32 %v1307, %v505
    %v1340 = vadd.f32 %v1308, %v506
    %v1341 = vadd.f32 %v1309, %v507
    %v1342 = vadd.f32 %v1310, %v508
    %v1343 = vadd.f32 %v1311, %v509
    %v1344 = vadd.f32 %v1312, %v510
    %v1345 = vadd.f32 %v1313, %v511
    %v1346 = vadd.f32 %v1314, %v512
    %v1347 = vadd.f32 %v1315, %v513
    %v1348 = vadd.f32 %v1316, %v514
    %v1349 = vadd.f32 %v1317, %v515
    %v1350 = vadd.f32 %v1318, %v516
    %v1351 = vadd.f32 %v1319, %v517
    %v1352 = vadd.f32 %v1320, %v518
    %v1353 = vadd.f32 %v1321, %v519
    %v1354 = vadd.f32 %v1322, %v520
    %v1355 = vadd.f32 %v1323, %v521
    %v1356 = vpack.c.bf16 %v1325, %v1324
    %v1357 = vpack.c.bf16 %v1327, %v1326
    %v1358 = vpack.c.bf16 %v1329, %v1328
    %v1359 = vpack.c.bf16 %v1331, %v1330
    %v1360 = vpack.c.bf16 %v1333, %v1332
    %v1361 = vpack.c.bf16 %v1335, %v1334
    %v1362 = vpack.c.bf16 %v1337, %v1336
    %v1363 = vpack.c.bf16 %v1339, %v1338
    %v1364 = vpack.c.bf16 %v1341, %v1340
    %v1365 = vpack.c.bf16 %v1343, %v1342
    %v1366 = vpack.c.bf16 %v1345, %v1344
    %v1367 = vpack.c.bf16 %v1347, %v1346
    %v1368 = vpack.c.bf16 %v1349, %v1348
    %v1369 = vpack.c.bf16 %v1351, %v1350
    %v1370 = vpack.c.bf16 %v1353, %v1352
    %v1371 = vpack.c.bf16 %v1355, %v1354
    %v1372 = vunpack.c.l.bf16 %v1356
    %v1373 = vunpack.c.h.bf16 %v1356
    %v1374 = vunpack.c.l.bf16 %v1357
    %v1375 = vunpack.c.h.bf16 %v1357
    %v1376 = vunpack.c.l.bf16 %v1358
    %v1377 = vunpack.c.h.bf16 %v1358
    %v1378 = vunpack.c.l.bf16 %v1359
    %v1379 = vunpack.c.h.bf16 %v1359
    %v1380 = vunpack.c.l.bf16 %v1360
    %v1381 = vunpack.c.h.bf16 %v1360
    %v1382 = vunpack.c.l.bf16 %v1361
    %v1383 = vunpack.c.h.bf16 %v1361
    %v1384 = vunpack.c.l.bf16 %v1362
    %v1385 = vunpack.c.h.bf16 %v1362
    %v1386 = vunpack.c.l.bf16 %v1363
    %v1387 = vunpack.c.h.bf16 %v1363
    %v1388 = vunpack.c.l.bf16 %v1364
    %v1389 = vunpack.c.h.bf16 %v1364
    %v1390 = vunpack.c.l.bf16 %v1365
    %v1391 = vunpack.c.h.bf16 %v1365
    %v1392 = vunpack.c.l.bf16 %v1366
    %v1393 = vunpack.c.h.bf16 %v1366
    %v1394 = vunpack.c.l.bf16 %v1367
    %v1395 = vunpack.c.h.bf16 %v1367
    %v1396 = vunpack.c.l.bf16 %v1368
    %v1397 = vunpack.c.h.bf16 %v1368
    %v1398 = vunpack.c.l.bf16 %v1369
    %v1399 = vunpack.c.h.bf16 %v1369
    %v1400 = vunpack.c.l.bf16 %v1370
    %v1401 = vunpack.c.h.bf16 %v1370
    %v1402 = vunpack.c.l.bf16 %v1371
    %v1403 = vunpack.c.h.bf16 %v1371
    %1404 = vmatpush.bf16.msra.mxu0 %v1363
    %1405 = vmatpush.bf16.msra.mxu0 %v1362
    %1406 = vmatpush.bf16.msra.mxu0 %v1361
    %1407 = vmatpush.bf16.msra.mxu0 %v1360
    %1408 = vmatpush.bf16.msra.mxu0 %v1359
    %1409 = vmatpush.bf16.msra.mxu0 %v1358
    %1410 = vmatpush.bf16.msra.mxu0 %v1357
    %1411 = vmatpush.bf16.msra.mxu0 %v1356
    %1412 = vmatmul.bf16.gmra.mxu0 %v890
    %v1413 = vpop.f32.mrf.mxu0
    %v1414 = vadd.f32 %v1372, %v1413
    %v1415 = vpop.f32.mrf.mxu0
    %v1416 = vadd.f32 %v1373, %v1415
    %1417 = vmatmul.bf16.gmra.mxu0 %v892
    %v1418 = vpop.f32.mrf.mxu0
    %v1419 = vadd.f32 %v1374, %v1418
    %v1420 = vpop.f32.mrf.mxu0
    %v1421 = vadd.f32 %v1375, %v1420
    %1422 = vmatmul.bf16.gmra.mxu0 %v894
    %v1423 = vpop.f32.mrf.mxu0
    %v1424 = vadd.f32 %v1376, %v1423
    %v1425 = vpop.f32.mrf.mxu0
    %v1426 = vadd.f32 %v1377, %v1425
    %1427 = vmatmul.bf16.gmra.mxu0 %v896
    %v1428 = vpop.f32.mrf.mxu0
    %v1429 = vadd.f32 %v1378, %v1428
    %v1430 = vpop.f32.mrf.mxu0
    %v1431 = vadd.f32 %v1379, %v1430
    %1432 = vmatmul.bf16.gmra.mxu0 %v898
    %v1433 = vpop.f32.mrf.mxu0
    %v1434 = vadd.f32 %v1380, %v1433
    %v1435 = vpop.f32.mrf.mxu0
    %v1436 = vadd.f32 %v1381, %v1435
    %1437 = vmatmul.bf16.gmra.mxu0 %v900
    %v1438 = vpop.f32.mrf.mxu0
    %v1439 = vadd.f32 %v1382, %v1438
    %v1440 = vpop.f32.mrf.mxu0
    %v1441 = vadd.f32 %v1383, %v1440
    %1442 = vmatmul.bf16.gmra.mxu0 %v902
    %v1443 = vpop.f32.mrf.mxu0
    %v1444 = vadd.f32 %v1384, %v1443
    %v1445 = vpop.f32.mrf.mxu0
    %v1446 = vadd.f32 %v1385, %v1445
    %1447 = vmatmul.bf16.gmra.mxu0 %v904
    %v1448 = vpop.f32.mrf.mxu0
    %v1449 = vadd.f32 %v1386, %v1448
    %v1450 = vpop.f32.mrf.mxu0
    %v1451 = vadd.f32 %v1387, %v1450
    %1452 = vmatmul.bf16.gmra.mxu0 %v906
    %v1453 = vpop.f32.mrf.mxu0
    %v1454 = vadd.f32 %v1388, %v1453
    %v1455 = vpop.f32.mrf.mxu0
    %v1456 = vadd.f32 %v1389, %v1455
    %1457 = vmatmul.bf16.gmra.mxu0 %v908
    %v1458 = vpop.f32.mrf.mxu0
    %v1459 = vadd.f32 %v1390, %v1458
    %v1460 = vpop.f32.mrf.mxu0
    %v1461 = vadd.f32 %v1391, %v1460
    %1462 = vmatmul.bf16.gmra.mxu0 %v910
    %v1463 = vpop.f32.mrf.mxu0
    %v1464 = vadd.f32 %v1392, %v1463
    %v1465 = vpop.f32.mrf.mxu0
    %v1466 = vadd.f32 %v1393, %v1465
    %1467 = vmatmul.bf16.gmra.mxu0 %v912
    %v1468 = vpop.f32.mrf.mxu0
    %v1469 = vadd.f32 %v1394, %v1468
    %v1470 = vpop.f32.mrf.mxu0
    %v1471 = vadd.f32 %v1395, %v1470
    %1472 = vmatmul.bf16.gmra.mxu0 %v914
    %v1473 = vpop.f32.mrf.mxu0
    %v1474 = vadd.f32 %v1396, %v1473
    %v1475 = vpop.f32.mrf.mxu0
    %v1476 = vadd.f32 %v1397, %v1475
    %1477 = vmatmul.bf16.gmra.mxu0 %v916
    %v1478 = vpop.f32.mrf.mxu0
    %v1479 = vadd.f32 %v1398, %v1478
    %v1480 = vpop.f32.mrf.mxu0
    %v1481 = vadd.f32 %v1399, %v1480
    %1482 = vmatmul.bf16.gmra.mxu0 %v918
    %v1483 = vpop.f32.mrf.mxu0
    %v1484 = vadd.f32 %v1400, %v1483
    %v1485 = vpop.f32.mrf.mxu0
    %v1486 = vadd.f32 %v1401, %v1485
    %1487 = vmatmul.bf16.gmra.mxu0 %v920
    %v1488 = vpop.f32.mrf.mxu0
    %v1489 = vadd.f32 %v1402, %v1488
    %v1490 = vpop.f32.mrf.mxu0
    %v1491 = vadd.f32 %v1403, %v1490
    %1492 = vdwg.mxu0
    %1493 = vmatpush.bf16.msra.mxu0 %v1371
    %1494 = vmatpush.bf16.msra.mxu0 %v1370
    %1495 = vmatpush.bf16.msra.mxu0 %v1369
    %1496 = vmatpush.bf16.msra.mxu0 %v1368
    %1497 = vmatpush.bf16.msra.mxu0 %v1367
    %1498 = vmatpush.bf16.msra.mxu0 %v1366
    %1499 = vmatpush.bf16.msra.mxu0 %v1365
    %1500 = vmatpush.bf16.msra.mxu0 %v1364
    %1501 = vmatmul.bf16.gmra.mxu0 %v891
    %v1502 = vpop.f32.mrf.mxu0
    %v1503 = vadd.f32 %v1414, %v1502
    %v1504 = vpop.f32.mrf.mxu0
    %v1505 = vadd.f32 %v1416, %v1504
    %1506 = vmatmul.bf16.gmra.mxu0 %v893
    %v1507 = vpop.f32.mrf.mxu0
    %v1508 = vadd.f32 %v1419, %v1507
    %v1509 = vpop.f32.mrf.mxu0
    %v1510 = vadd.f32 %v1421, %v1509
    %1511 = vmatmul.bf16.gmra.mxu0 %v895
    %v1512 = vpop.f32.mrf.mxu0
    %v1513 = vadd.f32 %v1424, %v1512
    %v1514 = vpop.f32.mrf.mxu0
    %v1515 = vadd.f32 %v1426, %v1514
    %1516 = vmatmul.bf16.gmra.mxu0 %v897
    %v1517 = vpop.f32.mrf.mxu0
    %v1518 = vadd.f32 %v1429, %v1517
    %v1519 = vpop.f32.mrf.mxu0
    %v1520 = vadd.f32 %v1431, %v1519
    %1521 = vmatmul.bf16.gmra.mxu0 %v899
    %v1522 = vpop.f32.mrf.mxu0
    %v1523 = vadd.f32 %v1434, %v1522
    %v1524 = vpop.f32.mrf.mxu0
    %v1525 = vadd.f32 %v1436, %v1524
    %1526 = vmatmul.bf16.gmra.mxu0 %v901
    %v1527 = vpop.f32.mrf.mxu0
    %v1528 = vadd.f32 %v1439, %v1527
    %v1529 = vpop.f32.mrf.mxu0
    %v1530 = vadd.f32 %v1441, %v1529
    %1531 = vmatmul.bf16.gmra.mxu0 %v903
    %v1532 = vpop.f32.mrf.mxu0
    %v1533 = vadd.f32 %v1444, %v1532
    %v1534 = vpop.f32.mrf.mxu0
    %v1535 = vadd.f32 %v1446, %v1534
    %1536 = vmatmul.bf16.gmra.mxu0 %v905
    %v1537 = vpop.f32.mrf.mxu0
    %v1538 = vadd.f32 %v1449, %v1537
    %v1539 = vpop.f32.mrf.mxu0
    %v1540 = vadd.f32 %v1451, %v1539
    %1541 = vmatmul.bf16.gmra.mxu0 %v907
    %v1542 = vpop.f32.mrf.mxu0
    %v1543 = vadd.f32 %v1454, %v1542
    %v1544 = vpop.f32.mrf.mxu0
    %v1545 = vadd.f32 %v1456, %v1544
    %1546 = vmatmul.bf16.gmra.mxu0 %v909
    %v1547 = vpop.f32.mrf.mxu0
    %v1548 = vadd.f32 %v1459, %v1547
    %v1549 = vpop.f32.mrf.mxu0
    %v1550 = vadd.f32 %v1461, %v1549
    %1551 = vmatmul.bf16.gmra.mxu0 %v911
    %v1552 = vpop.f32.mrf.mxu0
    %v1553 = vadd.f32 %v1464, %v1552
    %v1554 = vpop.f32.mrf.mxu0
    %v1555 = vadd.f32 %v1466, %v1554
    %1556 = vmatmul.bf16.gmra.mxu0 %v913
    %v1557 = vpop.f32.mrf.mxu0
    %v1558 = vadd.f32 %v1469, %v1557
    %v1559 = vpop.f32.mrf.mxu0
    %v1560 = vadd.f32 %v1471, %v1559
    %1561 = vmatmul.bf16.gmra.mxu0 %v915
    %v1562 = vpop.f32.mrf.mxu0
    %v1563 = vadd.f32 %v1474, %v1562
    %v1564 = vpop.f32.mrf.mxu0
    %v1565 = vadd.f32 %v1476, %v1564
    %1566 = vmatmul.bf16.gmra.mxu0 %v917
    %v1567 = vpop.f32.mrf.mxu0
    %v1568 = vadd.f32 %v1479, %v1567
    %v1569 = vpop.f32.mrf.mxu0
    %v1570 = vadd.f32 %v1481, %v1569
    %1571 = vmatmul.bf16.gmra.mxu0 %v919
    %v1572 = vpop.f32.mrf.mxu0
    %v1573 = vadd.f32 %v1484, %v1572
    %v1574 = vpop.f32.mrf.mxu0
    %v1575 = vadd.f32 %v1486, %v1574
    %1576 = vmatmul.bf16.gmra.mxu0 %v921
    %v1577 = vpop.f32.mrf.mxu0
    %v1578 = vadd.f32 %v1489, %v1577
    %v1579 = vpop.f32.mrf.mxu0
    %v1580 = vadd.f32 %v1491, %v1579
    %1581 = vdwg.mxu0
    %v1582 = vmul.f32 %v1135, %v1503
    %v1583 = vmul.f32 %v1140, %v1505
    %v1584 = vmul.f32 %v1145, %v1508
    %v1585 = vmul.f32 %v1150, %v1510
    %v1586 = vmul.f32 %v1155, %v1513
    %v1587 = vmul.f32 %v1160, %v1515
    %v1588 = vmul.f32 %v1165, %v1518
    %v1589 = vmul.f32 %v1170, %v1520
    %v1590 = vmul.f32 %v1175, %v1523
    %v1591 = vmul.f32 %v1180, %v1525
    %v1592 = vmul.f32 %v1185, %v1528
    %v1593 = vmul.f32 %v1190, %v1530
    %v1594 = vmul.f32 %v1195, %v1533
    %v1595 = vmul.f32 %v1200, %v1535
    %v1596 = vmul.f32 %v1205, %v1538
    %v1597 = vmul.f32 %v1210, %v1540
    %v1598 = vmul.f32 %v1215, %v1543
    %v1599 = vmul.f32 %v1220, %v1545
    %v1600 = vmul.f32 %v1225, %v1548
    %v1601 = vmul.f32 %v1230, %v1550
    %v1602 = vmul.f32 %v1235, %v1553
    %v1603 = vmul.f32 %v1240, %v1555
    %v1604 = vmul.f32 %v1245, %v1558
    %v1605 = vmul.f32 %v1250, %v1560
    %v1606 = vmul.f32 %v1255, %v1563
    %v1607 = vmul.f32 %v1260, %v1565
    %v1608 = vmul.f32 %v1265, %v1568
    %v1609 = vmul.f32 %v1270, %v1570
    %v1610 = vmul.f32 %v1275, %v1573
    %v1611 = vmul.f32 %v1280, %v1575
    %v1612 = vmul.f32 %v1285, %v1578
    %v1613 = vmul.f32 %v1290, %v1580
    %v1614 = vadd.f32 %v1582, %v490
    %v1615 = vadd.f32 %v1583, %v491
    %v1616 = vadd.f32 %v1584, %v492
    %v1617 = vadd.f32 %v1585, %v493
    %v1618 = vadd.f32 %v1586, %v494
    %v1619 = vadd.f32 %v1587, %v495
    %v1620 = vadd.f32 %v1588, %v496
    %v1621 = vadd.f32 %v1589, %v497
    %v1622 = vadd.f32 %v1590, %v498
    %v1623 = vadd.f32 %v1591, %v499
    %v1624 = vadd.f32 %v1592, %v500
    %v1625 = vadd.f32 %v1593, %v501
    %v1626 = vadd.f32 %v1594, %v502
    %v1627 = vadd.f32 %v1595, %v503
    %v1628 = vadd.f32 %v1596, %v504
    %v1629 = vadd.f32 %v1597, %v505
    %v1630 = vadd.f32 %v1598, %v506
    %v1631 = vadd.f32 %v1599, %v507
    %v1632 = vadd.f32 %v1600, %v508
    %v1633 = vadd.f32 %v1601, %v509
    %v1634 = vadd.f32 %v1602, %v510
    %v1635 = vadd.f32 %v1603, %v511
    %v1636 = vadd.f32 %v1604, %v512
    %v1637 = vadd.f32 %v1605, %v513
    %v1638 = vadd.f32 %v1606, %v514
    %v1639 = vadd.f32 %v1607, %v515
    %v1640 = vadd.f32 %v1608, %v516
    %v1641 = vadd.f32 %v1609, %v517
    %v1642 = vadd.f32 %v1610, %v518
    %v1643 = vadd.f32 %v1611, %v519
    %v1644 = vadd.f32 %v1612, %v520
    %v1645 = vadd.f32 %v1613, %v521
    %v1646 = vpack.c.bf16 %v1615, %v1614
    %v1647 = vpack.c.bf16 %v1617, %v1616
    %v1648 = vpack.c.bf16 %v1619, %v1618
    %v1649 = vpack.c.bf16 %v1621, %v1620
    %v1650 = vpack.c.bf16 %v1623, %v1622
    %v1651 = vpack.c.bf16 %v1625, %v1624
    %v1652 = vpack.c.bf16 %v1627, %v1626
    %v1653 = vpack.c.bf16 %v1629, %v1628
    %v1654 = vpack.c.bf16 %v1631, %v1630
    %v1655 = vpack.c.bf16 %v1633, %v1632
    %v1656 = vpack.c.bf16 %v1635, %v1634
    %v1657 = vpack.c.bf16 %v1637, %v1636
    %v1658 = vpack.c.bf16 %v1639, %v1638
    %v1659 = vpack.c.bf16 %v1641, %v1640
    %v1660 = vpack.c.bf16 %v1643, %v1642
    %v1661 = vpack.c.bf16 %v1645, %v1644
    %v1662 = vunpack.c.l.bf16 %v1646
    %v1663 = vunpack.c.h.bf16 %v1646
    %v1664 = vunpack.c.l.bf16 %v1647
    %v1665 = vunpack.c.h.bf16 %v1647
    %v1666 = vunpack.c.l.bf16 %v1648
    %v1667 = vunpack.c.h.bf16 %v1648
    %v1668 = vunpack.c.l.bf16 %v1649
    %v1669 = vunpack.c.h.bf16 %v1649
    %v1670 = vunpack.c.l.bf16 %v1650
    %v1671 = vunpack.c.h.bf16 %v1650
    %v1672 = vunpack.c.l.bf16 %v1651
    %v1673 = vunpack.c.h.bf16 %v1651
    %v1674 = vunpack.c.l.bf16 %v1652
    %v1675 = vunpack.c.h.bf16 %v1652
    %v1676 = vunpack.c.l.bf16 %v1653
    %v1677 = vunpack.c.h.bf16 %v1653
    %v1678 = vunpack.c.l.bf16 %v1654
    %v1679 = vunpack.c.h.bf16 %v1654
    %v1680 = vunpack.c.l.bf16 %v1655
    %v1681 = vunpack.c.h.bf16 %v1655
    %v1682 = vunpack.c.l.bf16 %v1656
    %v1683 = vunpack.c.h.bf16 %v1656
    %v1684 = vunpack.c.l.bf16 %v1657
    %v1685 = vunpack.c.h.bf16 %v1657
    %v1686 = vunpack.c.l.bf16 %v1658
    %v1687 = vunpack.c.h.bf16 %v1658
    %v1688 = vunpack.c.l.bf16 %v1659
    %v1689 = vunpack.c.h.bf16 %v1659
    %v1690 = vunpack.c.l.bf16 %v1660
    %v1691 = vunpack.c.h.bf16 %v1660
    %v1692 = vunpack.c.l.bf16 %v1661
    %v1693 = vunpack.c.h.bf16 %v1661
    %1694 = vmatpush.bf16.msra.mxu0 %v1653
    %1695 = vmatpush.bf16.msra.mxu0 %v1652
    %1696 = vmatpush.bf16.msra.mxu0 %v1651
    %1697 = vmatpush.bf16.msra.mxu0 %v1650
    %1698 = vmatpush.bf16.msra.mxu0 %v1649
    %1699 = vmatpush.bf16.msra.mxu0 %v1648
    %1700 = vmatpush.bf16.msra.mxu0 %v1647
    %1701 = vmatpush.bf16.msra.mxu0 %v1646
    %1702 = vmatmul.bf16.gmra.mxu0 %v890
    %v1703 = vpop.f32.mrf.mxu0
    %v1704 = vadd.f32 %v1662, %v1703
    %v1705 = vpop.f32.mrf.mxu0
    %v1706 = vadd.f32 %v1663, %v1705
    %1707 = vmatmul.bf16.gmra.mxu0 %v892
    %v1708 = vpop.f32.mrf.mxu0
    %v1709 = vadd.f32 %v1664, %v1708
    %v1710 = vpop.f32.mrf.mxu0
    %v1711 = vadd.f32 %v1665, %v1710
    %1712 = vmatmul.bf16.gmra.mxu0 %v894
    %v1713 = vpop.f32.mrf.mxu0
    %v1714 = vadd.f32 %v1666, %v1713
    %v1715 = vpop.f32.mrf.mxu0
    %v1716 = vadd.f32 %v1667, %v1715
    %1717 = vmatmul.bf16.gmra.mxu0 %v896
    %v1718 = vpop.f32.mrf.mxu0
    %v1719 = vadd.f32 %v1668, %v1718
    %v1720 = vpop.f32.mrf.mxu0
    %v1721 = vadd.f32 %v1669, %v1720
    %1722 = vmatmul.bf16.gmra.mxu0 %v898
    %v1723 = vpop.f32.mrf.mxu0
    %v1724 = vadd.f32 %v1670, %v1723
    %v1725 = vpop.f32.mrf.mxu0
    %v1726 = vadd.f32 %v1671, %v1725
    %1727 = vmatmul.bf16.gmra.mxu0 %v900
    %v1728 = vpop.f32.mrf.mxu0
    %v1729 = vadd.f32 %v1672, %v1728
    %v1730 = vpop.f32.mrf.mxu0
    %v1731 = vadd.f32 %v1673, %v1730
    %1732 = vmatmul.bf16.gmra.mxu0 %v902
    %v1733 = vpop.f32.mrf.mxu0
    %v1734 = vadd.f32 %v1674, %v1733
    %v1735 = vpop.f32.mrf.mxu0
    %v1736 = vadd.f32 %v1675, %v1735
    %1737 = vmatmul.bf16.gmra.mxu0 %v904
    %v1738 = vpop.f32.mrf.mxu0
    %v1739 = vadd.f32 %v1676, %v1738
    %v1740 = vpop.f32.mrf.mxu0
    %v1741 = vadd.f32 %v1677, %v1740
    %1742 = vmatmul.bf16.gmra.mxu0 %v906
    %v1743 = vpop.f32.mrf.mxu0
    %v1744 = vadd.f32 %v1678, %v1743
    %v1745 = vpop.f32.mrf.mxu0
    %v1746 = vadd.f32 %v1679, %v1745
    %1747 = vmatmul.bf16.gmra.mxu0 %v908
    %v1748 = vpop.f32.mrf.mxu0
    %v1749 = vadd.f32 %v1680, %v1748
    %v1750 = vpop.f32.mrf.mxu0
    %v1751 = vadd.f32 %v1681, %v1750
    %1752 = vmatmul.bf16.gmra.mxu0 %v910
    %v1753 = vpop.f32.mrf.mxu0
    %v1754 = vadd.f32 %v1682, %v1753
    %v1755 = vpop.f32.mrf.mxu0
    %v1756 = vadd.f32 %v1683, %v1755
    %1757 = vmatmul.bf16.gmra.mxu0 %v912
    %v1758 = vpop.f32.mrf.mxu0
    %v1759 = vadd.f32 %v1684, %v1758
    %v1760 = vpop.f32.mrf.mxu0
    %v1761 = vadd.f32 %v1685, %v1760
    %1762 = vmatmul.bf16.gmra.mxu0 %v914
    %v1763 = vpop.f32.mrf.mxu0
    %v1764 = vadd.f32 %v1686, %v1763
    %v1765 = vpop.f32.mrf.mxu0
    %v1766 = vadd.f32 %v1687, %v1765
    %1767 = vmatmul.bf16.gmra.mxu0 %v916
    %v1768 = vpop.f32.mrf.mxu0
    %v1769 = vadd.f32 %v1688, %v1768
    %v1770 = vpop.f32.mrf.mxu0
    %v1771 = vadd.f32 %v1689, %v1770
    %1772 = vmatmul.bf16.gmra.mxu0 %v918
    %v1773 = vpop.f32.mrf.mxu0
    %v1774 = vadd.f32 %v1690, %v1773
    %v1775 = vpop.f32.mrf.mxu0
    %v1776 = vadd.f32 %v1691, %v1775
    %1777 = vmatmul.bf16.gmra.mxu0 %v920
    %v1778 = vpop.f32.mrf.mxu0
    %v1779 = vadd.f32 %v1692, %v1778
    %v1780 = vpop.f32.mrf.mxu0
    %v1781 = vadd.f32 %v1693, %v1780
    %1782 = vdwg.mxu0
    %1783 = vmatpush.bf16.msra.mxu0 %v1661
    %1784 = vmatpush.bf16.msra.mxu0 %v1660
    %1785 = vmatpush.bf16.msra.mxu0 %v1659
    %1786 = vmatpush.bf16.msra.mxu0 %v1658
    %1787 = vmatpush.bf16.msra.mxu0 %v1657
    %1788 = vmatpush.bf16.msra.mxu0 %v1656
    %1789 = vmatpush.bf16.msra.mxu0 %v1655
    %1790 = vmatpush.bf16.msra.mxu0 %v1654
    %1791 = vmatmul.bf16.gmra.mxu0 %v891
    %v1792 = vpop.f32.mrf.mxu0
    %v1793 = vadd.f32 %v1704, %v1792
    %v1794 = vpop.f32.mrf.mxu0
    %v1795 = vadd.f32 %v1706, %v1794
    %1796 = vmatmul.bf16.gmra.mxu0 %v893
    %v1797 = vpop.f32.mrf.mxu0
    %v1798 = vadd.f32 %v1709, %v1797
    %v1799 = vpop.f32.mrf.mxu0
    %v1800 = vadd.f32 %v1711, %v1799
    %1801 = vmatmul.bf16.gmra.mxu0 %v895
    %v1802 = vpop.f32.mrf.mxu0
    %v1803 = vadd.f32 %v1714, %v1802
    %v1804 = vpop.f32.mrf.mxu0
    %v1805 = vadd.f32 %v1716, %v1804
    %1806 = vmatmul.bf16.gmra.mxu0 %v897
    %v1807 = vpop.f32.mrf.mxu0
    %v1808 = vadd.f32 %v1719, %v1807
    %v1809 = vpop.f32.mrf.mxu0
    %v1810 = vadd.f32 %v1721, %v1809
    %1811 = vmatmul.bf16.gmra.mxu0 %v899
    %v1812 = vpop.f32.mrf.mxu0
    %v1813 = vadd.f32 %v1724, %v1812
    %v1814 = vpop.f32.mrf.mxu0
    %v1815 = vadd.f32 %v1726, %v1814
    %1816 = vmatmul.bf16.gmra.mxu0 %v901
    %v1817 = vpop.f32.mrf.mxu0
    %v1818 = vadd.f32 %v1729, %v1817
    %v1819 = vpop.f32.mrf.mxu0
    %v1820 = vadd.f32 %v1731, %v1819
    %1821 = vmatmul.bf16.gmra.mxu0 %v903
    %v1822 = vpop.f32.mrf.mxu0
    %v1823 = vadd.f32 %v1734, %v1822
    %v1824 = vpop.f32.mrf.mxu0
    %v1825 = vadd.f32 %v1736, %v1824
    %1826 = vmatmul.bf16.gmra.mxu0 %v905
    %v1827 = vpop.f32.mrf.mxu0
    %v1828 = vadd.f32 %v1739, %v1827
    %v1829 = vpop.f32.mrf.mxu0
    %v1830 = vadd.f32 %v1741, %v1829
    %1831 = vmatmul.bf16.gmra.mxu0 %v907
    %v1832 = vpop.f32.mrf.mxu0
    %v1833 = vadd.f32 %v1744, %v1832
    %v1834 = vpop.f32.mrf.mxu0
    %v1835 = vadd.f32 %v1746, %v1834
    %1836 = vmatmul.bf16.gmra.mxu0 %v909
    %v1837 = vpop.f32.mrf.mxu0
    %v1838 = vadd.f32 %v1749, %v1837
    %v1839 = vpop.f32.mrf.mxu0
    %v1840 = vadd.f32 %v1751, %v1839
    %1841 = vmatmul.bf16.gmra.mxu0 %v911
    %v1842 = vpop.f32.mrf.mxu0
    %v1843 = vadd.f32 %v1754, %v1842
    %v1844 = vpop.f32.mrf.mxu0
    %v1845 = vadd.f32 %v1756, %v1844
    %1846 = vmatmul.bf16.gmra.mxu0 %v913
    %v1847 = vpop.f32.mrf.mxu0
    %v1848 = vadd.f32 %v1759, %v1847
    %v1849 = vpop.f32.mrf.mxu0
    %v1850 = vadd.f32 %v1761, %v1849
    %1851 = vmatmul.bf16.gmra.mxu0 %v915
    %v1852 = vpop.f32.mrf.mxu0
    %v1853 = vadd.f32 %v1764, %v1852
    %v1854 = vpop.f32.mrf.mxu0
    %v1855 = vadd.f32 %v1766, %v1854
    %1856 = vmatmul.bf16.gmra.mxu0 %v917
    %v1857 = vpop.f32.mrf.mxu0
    %v1858 = vadd.f32 %v1769, %v1857
    %v1859 = vpop.f32.mrf.mxu0
    %v1860 = vadd.f32 %v1771, %v1859
    %1861 = vmatmul.bf16.gmra.mxu0 %v919
    %v1862 = vpop.f32.mrf.mxu0
    %v1863 = vadd.f32 %v1774, %v1862
    %v1864 = vpop.f32.mrf.mxu0
    %v1865 = vadd.f32 %v1776, %v1864
    %1866 = vmatmul.bf16.gmra.mxu0 %v921
    %v1867 = vpop.f32.mrf.mxu0
    %v1868 = vadd.f32 %v1779, %v1867
    %v1869 = vpop.f32.mrf.mxu0
    %v1870 = vadd.f32 %v1781, %v1869
    %1871 = vdwg.mxu0
    %1873 = vset.pattern.permute.xlu0 0
    %1874 = vperm.xlu0 %1873, %v266
    %v1875 = vpop.permute.xlu0 %1874
    %1878 = vset.pattern.permute.xlu0 0
    %1879 = vperm.xlu0 %1878, %v267
    %v1880 = vpop.permute.xlu0 %1879
    %1883 = vset.pattern.permute.xlu0 0
    %1884 = vperm.xlu0 %1883, %v268
    %v1885 = vpop.permute.xlu0 %1884
    %1888 = vset.pattern.permute.xlu0 0
    %1889 = vperm.xlu0 %1888, %v269
    %v1890 = vpop.permute.xlu0 %1889
    %1893 = vset.pattern.permute.xlu0 0
    %1894 = vperm.xlu0 %1893, %v270
    %v1895 = vpop.permute.xlu0 %1894
    %1898 = vset.pattern.permute.xlu0 0
    %1899 = vperm.xlu0 %1898, %v271
    %v1900 = vpop.permute.xlu0 %1899
    %1903 = vset.pattern.permute.xlu0 0
    %1904 = vperm.xlu0 %1903, %v272
    %v1905 = vpop.permute.xlu0 %1904
    %1908 = vset.pattern.permute.xlu0 0
    %1909 = vperm.xlu0 %1908, %v273
    %v1910 = vpop.permute.xlu0 %1909
    %1913 = vset.pattern.permute.xlu0 0
    %1914 = vperm.xlu0 %1913, %v274
    %v1915 = vpop.permute.xlu0 %1914
    %1918 = vset.pattern.permute.xlu0 0
    %1919 = vperm.xlu0 %1918, %v275
    %v1920 = vpop.permute.xlu0 %1919
    %1923 = vset.pattern.permute.xlu0 0
    %1924 = vperm.xlu0 %1923, %v276
    %v1925 = vpop.permute.xlu0 %1924
    %1928 = vset.pattern.permute.xlu0 0
    %1929 = vperm.xlu0 %1928, %v277
    %v1930 = vpop.permute.xlu0 %1929
    %1933 = vset.pattern.permute.xlu0 0
    %1934 = vperm.xlu0 %1933, %v278
    %v1935 = vpop.permute.xlu0 %1934
    %1938 = vset.pattern.permute.xlu0 0
    %1939 = vperm.xlu0 %1938, %v279
    %v1940 = vpop.permute.xlu0 %1939
    %1943 = vset.pattern.permute.xlu0 0
    %1944 = vperm.xlu0 %1943, %v280
    %v1945 = vpop.permute.xlu0 %1944
    %1948 = vset.pattern.permute.xlu0 0
    %1949 = vperm.xlu0 %1948, %v281
    %v1950 = vpop.permute.xlu0 %1949
    %1953 = vset.pattern.permute.xlu0 0
    %1954 = vperm.xlu0 %1953, %v282
    %v1955 = vpop.permute.xlu0 %1954
    %1958 = vset.pattern.permute.xlu0 0
    %1959 = vperm.xlu0 %1958, %v283
    %v1960 = vpop.permute.xlu0 %1959
    %1963 = vset.pattern.permute.xlu0 0
    %1964 = vperm.xlu0 %1963, %v284
    %v1965 = vpop.permute.xlu0 %1964
    %1968 = vset.pattern.permute.xlu0 0
    %1969 = vperm.xlu0 %1968, %v285
    %v1970 = vpop.permute.xlu0 %1969
    %1973 = vset.pattern.permute.xlu0 0
    %1974 = vperm.xlu0 %1973, %v286
    %v1975 = vpop.permute.xlu0 %1974
    %1978 = vset.pattern.permute.xlu0 0
    %1979 = vperm.xlu0 %1978, %v287
    %v1980 = vpop.permute.xlu0 %1979
    %1983 = vset.pattern.permute.xlu0 0
    %1984 = vperm.xlu0 %1983, %v288
    %v1985 = vpop.permute.xlu0 %1984
    %1988 = vset.pattern.permute.xlu0 0
    %1989 = vperm.xlu0 %1988, %v289
    %v1990 = vpop.permute.xlu0 %1989
    %1993 = vset.pattern.permute.xlu0 0
    %1994 = vperm.xlu0 %1993, %v290
    %v1995 = vpop.permute.xlu0 %1994
    %1998 = vset.pattern.permute.xlu0 0
    %1999 = vperm.xlu0 %1998, %v291
    %v2000 = vpop.permute.xlu0 %1999
    %2003 = vset.pattern.permute.xlu0 0
    %2004 = vperm.xlu0 %2003, %v292
    %v2005 = vpop.permute.xlu0 %2004
    %2008 = vset.pattern.permute.xlu0 0
    %2009 = vperm.xlu0 %2008, %v293
    %v2010 = vpop.permute.xlu0 %2009
    %2013 = vset.pattern.permute.xlu0 0
    %2014 = vperm.xlu0 %2013, %v294
    %v2015 = vpop.permute.xlu0 %2014
    %2018 = vset.pattern.permute.xlu0 0
    %2019 = vperm.xlu0 %2018, %v295
    %v2020 = vpop.permute.xlu0 %2019
    %2023 = vset.pattern.permute.xlu0 0
    %2024 = vperm.xlu0 %2023, %v296
    %v2025 = vpop.permute.xlu0 %2024
    %2028 = vset.pattern.permute.xlu0 0
    %2029 = vperm.xlu0 %2028, %v297
    %v2030 = vpop.permute.xlu0 %2029
    %v2032 = vmul.f32 %v1875, %v1793
    %v2033 = vmul.f32 %v1880, %v1795
    %v2034 = vmul.f32 %v1885, %v1798
    %v2035 = vmul.f32 %v1890, %v1800
    %v2036 = vmul.f32 %v1895, %v1803
    %v2037 = vmul.f32 %v1900, %v1805
    %v2038 = vmul.f32 %v1905, %v1808
    %v2039 = vmul.f32 %v1910, %v1810
    %v2040 = vmul.f32 %v1915, %v1813
    %v2041 = vmul.f32 %v1920, %v1815
    %v2042 = vmul.f32 %v1925, %v1818
    %v2043 = vmul.f32 %v1930, %v1820
    %v2044 = vmul.f32 %v1935, %v1823
    %v2045 = vmul.f32 %v1940, %v1825
    %v2046 = vmul.f32 %v1945, %v1828
    %v2047 = vmul.f32 %v1950, %v1830
    %v2048 = vmul.f32 %v1955, %v1833
    %v2049 = vmul.f32 %v1960, %v1835
    %v2050 = vmul.f32 %v1965, %v1838
    %v2051 = vmul.f32 %v1970, %v1840
    %v2052 = vmul.f32 %v1975, %v1843
    %v2053 = vmul.f32 %v1980, %v1845
    %v2054 = vmul.f32 %v1985, %v1848
    %v2055 = vmul.f32 %v1990, %v1850
    %v2056 = vmul.f32 %v1995, %v1853
    %v2057 = vmul.f32 %v2000, %v1855
    %v2058 = vmul.f32 %v2005, %v1858
    %v2059 = vmul.f32 %v2010, %v1860
    %v2060 = vmul.f32 %v2015, %v1863
    %v2061 = vmul.f32 %v2020, %v1865
    %v2062 = vmul.f32 %v2025, %v1868
    %v2063 = vmul.f32 %v2030, %v1870
    %v2064 = vadd.f32 %v2032, %v522
    %v2065 = vadd.f32 %v2033, %v523
    %v2066 = vadd.f32 %v2034, %v524
    %v2067 = vadd.f32 %v2035, %v525
    %v2068 = vadd.f32 %v2036, %v526
    %v2069 = vadd.f32 %v2037, %v527
    %v2070 = vadd.f32 %v2038, %v528
    %v2071 = vadd.f32 %v2039, %v529
    %v2072 = vadd.f32 %v2040, %v530
    %v2073 = vadd.f32 %v2041, %v531
    %v2074 = vadd.f32 %v2042, %v532
    %v2075 = vadd.f32 %v2043, %v533
    %v2076 = vadd.f32 %v2044, %v534
    %v2077 = vadd.f32 %v2045, %v535
    %v2078 = vadd.f32 %v2046, %v536
    %v2079 = vadd.f32 %v2047, %v537
    %v2080 = vadd.f32 %v2048, %v538
    %v2081 = vadd.f32 %v2049, %v539
    %v2082 = vadd.f32 %v2050, %v540
    %v2083 = vadd.f32 %v2051, %v541
    %v2084 = vadd.f32 %v2052, %v542
    %v2085 = vadd.f32 %v2053, %v543
    %v2086 = vadd.f32 %v2054, %v544
    %v2087 = vadd.f32 %v2055, %v545
    %v2088 = vadd.f32 %v2056, %v546
    %v2089 = vadd.f32 %v2057, %v547
    %v2090 = vadd.f32 %v2058, %v548
    %v2091 = vadd.f32 %v2059, %v549
    %v2092 = vadd.f32 %v2060, %v550
    %v2093 = vadd.f32 %v2061, %v551
    %v2094 = vadd.f32 %v2062, %v552
    %v2095 = vadd.f32 %v2063, %v553
    %v2096 = vpack.c.bf16 %v2065, %v2064
    %v2097 = vpack.c.bf16 %v2067, %v2066
    %v2098 = vpack.c.bf16 %v2069, %v2068
    %v2099 = vpack.c.bf16 %v2071, %v2070
    %v2100 = vpack.c.bf16 %v2073, %v2072
    %v2101 = vpack.c.bf16 %v2075, %v2074
    %v2102 = vpack.c.bf16 %v2077, %v2076
    %v2103 = vpack.c.bf16 %v2079, %v2078
    %v2104 = vpack.c.bf16 %v2081, %v2080
    %v2105 = vpack.c.bf16 %v2083, %v2082
    %v2106 = vpack.c.bf16 %v2085, %v2084
    %v2107 = vpack.c.bf16 %v2087, %v2086
    %v2108 = vpack.c.bf16 %v2089, %v2088
    %v2109 = vpack.c.bf16 %v2091, %v2090
    %v2110 = vpack.c.bf16 %v2093, %v2092
    %v2111 = vpack.c.bf16 %v2095, %v2094
    %v2112 = vld [vmem:[#allocation5] sm:$0xf]
    %v2113 = vld [vmem:[#allocation5 + $0x4] sm:$0xf]
    %v2114 = vld [vmem:[#allocation5 + $0x8] sm:$0xf]
    %v2115 = vld [vmem:[#allocation5 + $0xc] sm:$0xf]
    %v2116 = vld [vmem:[#allocation5 + $0x10] sm:$0xf]
    %v2117 = vld [vmem:[#allocation5 + $0x14] sm:$0xf]
    %v2118 = vld [vmem:[#allocation5 + $0x18] sm:$0xf]
    %v2119 = vld [vmem:[#allocation5 + $0x1c] sm:$0xf]
    %v2120 = vld [vmem:[#allocation5 + $0x20] sm:$0xf]
    %v2121 = vld [vmem:[#allocation5 + $0x24] sm:$0xf]
    %v2122 = vld [vmem:[#allocation5 + $0x28] sm:$0xf]
    %v2123 = vld [vmem:[#allocation5 + $0x2c] sm:$0xf]
    %v2124 = vld [vmem:[#allocation5 + $0x30] sm:$0xf]
    %v2125 = vld [vmem:[#allocation5 + $0x34] sm:$0xf]
    %v2126 = vld [vmem:[#allocation5 + $0x38] sm:$0xf]
    %v2127 = vld [vmem:[#allocation5 + $0x3c] sm:$0xf]
    %v2128 = vld [vmem:[%s4] sm:$0x1]
    %v2130 = vperm.slane %v2128, 0
    %v2148 = vunpack.c.l.b16 %v2112
    %v2149 = vunpack.c.l.b16 %v2113
    %v2150 = vunpack.c.l.b16 %v2114
    %v2151 = vunpack.c.l.b16 %v2115
    %v2152 = vunpack.c.l.b16 %v2116
    %v2153 = vunpack.c.l.b16 %v2117
    %v2154 = vunpack.c.l.b16 %v2118
    %v2155 = vunpack.c.l.b16 %v2119
    %v2156 = vunpack.c.l.b16 %v2120
    %v2157 = vunpack.c.l.b16 %v2121
    %v2158 = vunpack.c.l.b16 %v2122
    %v2159 = vunpack.c.l.b16 %v2123
    %v2160 = vunpack.c.l.b16 %v2124
    %v2161 = vunpack.c.l.b16 %v2125
    %v2162 = vunpack.c.l.b16 %v2126
    %v2163 = vunpack.c.l.b16 %v2127
    %v2164 = vpack.c.b16 %v2149, %v2148
    %v2165 = vpack.c.b16 %v2151, %v2150
    %v2166 = vpack.c.b16 %v2153, %v2152
    %v2167 = vpack.c.b16 %v2155, %v2154
    %v2168 = vpack.c.b16 %v2157, %v2156
    %v2169 = vpack.c.b16 %v2159, %v2158
    %v2170 = vpack.c.b16 %v2161, %v2160
    %v2171 = vpack.c.b16 %v2163, %v2162
    %2180 = vmatpush.bf16.msra.mxu0 %v2171
    %2181 = vmatpush.bf16.msra.mxu0 %v2170
    %2182 = vmatpush.bf16.msra.mxu0 %v2169
    %2183 = vmatpush.bf16.msra.mxu0 %v2168
    %2184 = vmatpush.bf16.msra.mxu0 %v2167
    %2185 = vmatpush.bf16.msra.mxu0 %v2166
    %2186 = vmatpush.bf16.msra.mxu0 %v2165
    %2187 = vmatpush.bf16.msra.mxu0 %v2164
    %2188 = vmatmul.bf16.gmra.mxu0 %v2096
    %v2189 = vpop.f32.mrf.mxu0
    %v2190 = vadd.f32 %v2130, %v2189
    %v2191 = vpop.f32.mrf.mxu0
    %v2192 = vadd.f32 %v2130, %v2191
    %2193 = vmatmul.bf16.gmra.mxu0 %v2097
    %v2194 = vpop.f32.mrf.mxu0
    %v2195 = vadd.f32 %v2130, %v2194
    %v2196 = vpop.f32.mrf.mxu0
    %v2197 = vadd.f32 %v2130, %v2196
    %2198 = vmatmul.bf16.gmra.mxu0 %v2098
    %v2199 = vpop.f32.mrf.mxu0
    %v2200 = vadd.f32 %v2130, %v2199
    %v2201 = vpop.f32.mrf.mxu0
    %v2202 = vadd.f32 %v2130, %v2201
    %2203 = vmatmul.bf16.gmra.mxu0 %v2099
    %v2204 = vpop.f32.mrf.mxu0
    %v2205 = vadd.f32 %v2130, %v2204
    %v2206 = vpop.f32.mrf.mxu0
    %v2207 = vadd.f32 %v2130, %v2206
    %2208 = vmatmul.bf16.gmra.mxu0 %v2100
    %v2209 = vpop.f32.mrf.mxu0
    %v2210 = vadd.f32 %v2130, %v2209
    %v2211 = vpop.f32.mrf.mxu0
    %v2212 = vadd.f32 %v2130, %v2211
    %2213 = vmatmul.bf16.gmra.mxu0 %v2101
    %v2214 = vpop.f32.mrf.mxu0
    %v2215 = vadd.f32 %v2130, %v2214
    %v2216 = vpop.f32.mrf.mxu0
    %v2217 = vadd.f32 %v2130, %v2216
    %2218 = vmatmul.bf16.gmra.mxu0 %v2102
    %v2219 = vpop.f32.mrf.mxu0
    %v2220 = vadd.f32 %v2130, %v2219
    %v2221 = vpop.f32.mrf.mxu0
    %v2222 = vadd.f32 %v2130, %v2221
    %2223 = vmatmul.bf16.gmra.mxu0 %v2103
    %v2224 = vpop.f32.mrf.mxu0
    %v2225 = vadd.f32 %v2130, %v2224
    %v2226 = vpop.f32.mrf.mxu0
    %v2227 = vadd.f32 %v2130, %v2226
    %2228 = vmatmul.bf16.gmra.mxu0 %v2104
    %v2229 = vpop.f32.mrf.mxu0
    %v2230 = vadd.f32 %v2130, %v2229
    %v2231 = vpop.f32.mrf.mxu0
    %v2232 = vadd.f32 %v2130, %v2231
    %2233 = vmatmul.bf16.gmra.mxu0 %v2105
    %v2234 = vpop.f32.mrf.mxu0
    %v2235 = vadd.f32 %v2130, %v2234
    %v2236 = vpop.f32.mrf.mxu0
    %v2237 = vadd.f32 %v2130, %v2236
    %2238 = vmatmul.bf16.gmra.mxu0 %v2106
    %v2239 = vpop.f32.mrf.mxu0
    %v2240 = vadd.f32 %v2130, %v2239
    %v2241 = vpop.f32.mrf.mxu0
    %v2242 = vadd.f32 %v2130, %v2241
    %2243 = vmatmul.bf16.gmra.mxu0 %v2107
    %v2244 = vpop.f32.mrf.mxu0
    %v2245 = vadd.f32 %v2130, %v2244
    %v2246 = vpop.f32.mrf.mxu0
    %v2247 = vadd.f32 %v2130, %v2246
    %2248 = vmatmul.bf16.gmra.mxu0 %v2108
    %v2249 = vpop.f32.mrf.mxu0
    %v2250 = vadd.f32 %v2130, %v2249
    %v2251 = vpop.f32.mrf.mxu0
    %v2252 = vadd.f32 %v2130, %v2251
    %2253 = vmatmul.bf16.gmra.mxu0 %v2109
    %v2254 = vpop.f32.mrf.mxu0
    %v2255 = vadd.f32 %v2130, %v2254
    %v2256 = vpop.f32.mrf.mxu0
    %v2257 = vadd.f32 %v2130, %v2256
    %2258 = vmatmul.bf16.gmra.mxu0 %v2110
    %v2259 = vpop.f32.mrf.mxu0
    %v2260 = vadd.f32 %v2130, %v2259
    %v2261 = vpop.f32.mrf.mxu0
    %v2262 = vadd.f32 %v2130, %v2261
    %2263 = vmatmul.bf16.gmra.mxu0 %v2111
    %v2264 = vpop.f32.mrf.mxu0
    %v2265 = vadd.f32 %v2130, %v2264
    %v2266 = vpop.f32.mrf.mxu0
    %v2267 = vadd.f32 %v2130, %v2266
    %2268 = vdwg.mxu0
    %v2269 = vmax.f32 %v2190, 0.0
    %v2270 = vmax.f32 %v2192, 0.0
    %v2271 = vmax.f32 %v2195, 0.0
    %v2272 = vmax.f32 %v2197, 0.0
    %v2273 = vmax.f32 %v2200, 0.0
    %v2274 = vmax.f32 %v2202, 0.0
    %v2275 = vmax.f32 %v2205, 0.0
    %v2276 = vmax.f32 %v2207, 0.0
    %v2277 = vmax.f32 %v2210, 0.0
    %v2278 = vmax.f32 %v2212, 0.0
    %v2279 = vmax.f32 %v2215, 0.0
    %v2280 = vmax.f32 %v2217, 0.0
    %v2281 = vmax.f32 %v2220, 0.0
    %v2282 = vmax.f32 %v2222, 0.0
    %v2283 = vmax.f32 %v2225, 0.0
    %v2284 = vmax.f32 %v2227, 0.0
    %v2285 = vmax.f32 %v2230, 0.0
    %v2286 = vmax.f32 %v2232, 0.0
    %v2287 = vmax.f32 %v2235, 0.0
    %v2288 = vmax.f32 %v2237, 0.0
    %v2289 = vmax.f32 %v2240, 0.0
    %v2290 = vmax.f32 %v2242, 0.0
    %v2291 = vmax.f32 %v2245, 0.0
    %v2292 = vmax.f32 %v2247, 0.0
    %v2293 = vmax.f32 %v2250, 0.0
    %v2294 = vmax.f32 %v2252, 0.0
    %v2295 = vmax.f32 %v2255, 0.0
    %v2296 = vmax.f32 %v2257, 0.0
    %v2297 = vmax.f32 %v2260, 0.0
    %v2298 = vmax.f32 %v2262, 0.0
    %v2299 = vmax.f32 %v2265, 0.0
    %v2300 = vmax.f32 %v2267, 0.0
    %v2301 = vpack.c.bf16 %v2270, %v2269
    %v2302 = vpack.c.bf16 %v2272, %v2271
    %v2303 = vpack.c.bf16 %v2274, %v2273
    %v2304 = vpack.c.bf16 %v2276, %v2275
    %v2305 = vpack.c.bf16 %v2278, %v2277
    %v2306 = vpack.c.bf16 %v2280, %v2279
    %v2307 = vpack.c.bf16 %v2282, %v2281
    %v2308 = vpack.c.bf16 %v2284, %v2283
    %v2309 = vpack.c.bf16 %v2286, %v2285
    %v2310 = vpack.c.bf16 %v2288, %v2287
    %v2311 = vpack.c.bf16 %v2290, %v2289
    %v2312 = vpack.c.bf16 %v2292, %v2291
    %v2313 = vpack.c.bf16 %v2294, %v2293
    %v2314 = vpack.c.bf16 %v2296, %v2295
    %v2315 = vpack.c.bf16 %v2298, %v2297
    %v2316 = vpack.c.bf16 %v2300, %v2299
    %v2317 = vld [vmem:[#allocation7] sm:$0xf]
    %v2318 = vld [vmem:[#allocation7 + $0x4] sm:$0xf]
    %v2319 = vld [vmem:[#allocation7 + $0x8] sm:$0xf]
    %v2320 = vld [vmem:[#allocation7 + $0xc] sm:$0xf]
    %v2321 = vld [vmem:[#allocation7 + $0x10] sm:$0xf]
    %v2322 = vld [vmem:[#allocation7 + $0x14] sm:$0xf]
    %v2323 = vld [vmem:[#allocation7 + $0x18] sm:$0xf]
    %v2324 = vld [vmem:[#allocation7 + $0x1c] sm:$0xf]
    %v2325 = vld [vmem:[#allocation7 + $0x20] sm:$0xf]
    %v2326 = vld [vmem:[#allocation7 + $0x24] sm:$0xf]
    %v2327 = vld [vmem:[#allocation7 + $0x28] sm:$0xf]
    %v2328 = vld [vmem:[#allocation7 + $0x2c] sm:$0xf]
    %v2329 = vld [vmem:[#allocation7 + $0x30] sm:$0xf]
    %v2330 = vld [vmem:[#allocation7 + $0x34] sm:$0xf]
    %v2331 = vld [vmem:[#allocation7 + $0x38] sm:$0xf]
    %v2332 = vld [vmem:[#allocation7 + $0x3c] sm:$0xf]
    %v2333 = vld [vmem:[%s6] sm:$0x1]
    %v2335 = vperm.slane %v2333, 0
    %v2353 = vunpack.c.l.b16 %v2317
    %v2354 = vunpack.c.l.b16 %v2318
    %v2355 = vunpack.c.l.b16 %v2319
    %v2356 = vunpack.c.l.b16 %v2320
    %v2357 = vunpack.c.l.b16 %v2321
    %v2358 = vunpack.c.l.b16 %v2322
    %v2359 = vunpack.c.l.b16 %v2323
    %v2360 = vunpack.c.l.b16 %v2324
    %v2361 = vunpack.c.l.b16 %v2325
    %v2362 = vunpack.c.l.b16 %v2326
    %v2363 = vunpack.c.l.b16 %v2327
    %v2364 = vunpack.c.l.b16 %v2328
    %v2365 = vunpack.c.l.b16 %v2329
    %v2366 = vunpack.c.l.b16 %v2330
    %v2367 = vunpack.c.l.b16 %v2331
    %v2368 = vunpack.c.l.b16 %v2332
    %v2369 = vpack.c.b16 %v2354, %v2353
    %v2370 = vpack.c.b16 %v2356, %v2355
    %v2371 = vpack.c.b16 %v2358, %v2357
    %v2372 = vpack.c.b16 %v2360, %v2359
    %v2373 = vpack.c.b16 %v2362, %v2361
    %v2374 = vpack.c.b16 %v2364, %v2363
    %v2375 = vpack.c.b16 %v2366, %v2365
    %v2376 = vpack.c.b16 %v2368, %v2367
    %2385 = vmatpush.bf16.msra.mxu0 %v2376
    %2386 = vmatpush.bf16.msra.mxu0 %v2375
    %2387 = vmatpush.bf16.msra.mxu0 %v2374
    %2388 = vmatpush.bf16.msra.mxu0 %v2373
    %2389 = vmatpush.bf16.msra.mxu0 %v2372
    %2390 = vmatpush.bf16.msra.mxu0 %v2371
    %2391 = vmatpush.bf16.msra.mxu0 %v2370
    %2392 = vmatpush.bf16.msra.mxu0 %v2369
    %2393 = vmatmul.bf16.gmra.mxu0 %v2301
    %v2394 = vpop.f32.mrf.mxu0
    %v2395 = vadd.f32 %v2335, %v2394
    %v2396 = vpop.f32.mrf.mxu0
    %v2397 = vadd.f32 %v2335, %v2396
    %2398 = vmatmul.bf16.gmra.mxu0 %v2302
    %v2399 = vpop.f32.mrf.mxu0
    %v2400 = vadd.f32 %v2335, %v2399
    %v2401 = vpop.f32.mrf.mxu0
    %v2402 = vadd.f32 %v2335, %v2401
    %2403 = vmatmul.bf16.gmra.mxu0 %v2303
    %v2404 = vpop.f32.mrf.mxu0
    %v2405 = vadd.f32 %v2335, %v2404
    %v2406 = vpop.f32.mrf.mxu0
    %v2407 = vadd.f32 %v2335, %v2406
    %2408 = vmatmul.bf16.gmra.mxu0 %v2304
    %v2409 = vpop.f32.mrf.mxu0
    %v2410 = vadd.f32 %v2335, %v2409
    %v2411 = vpop.f32.mrf.mxu0
    %v2412 = vadd.f32 %v2335, %v2411
    %2413 = vmatmul.bf16.gmra.mxu0 %v2305
    %v2414 = vpop.f32.mrf.mxu0
    %v2415 = vadd.f32 %v2335, %v2414
    %v2416 = vpop.f32.mrf.mxu0
    %v2417 = vadd.f32 %v2335, %v2416
    %2418 = vmatmul.bf16.gmra.mxu0 %v2306
    %v2419 = vpop.f32.mrf.mxu0
    %v2420 = vadd.f32 %v2335, %v2419
    %v2421 = vpop.f32.mrf.mxu0
    %v2422 = vadd.f32 %v2335, %v2421
    %2423 = vmatmul.bf16.gmra.mxu0 %v2307
    %v2424 = vpop.f32.mrf.mxu0
    %v2425 = vadd.f32 %v2335, %v2424
    %v2426 = vpop.f32.mrf.mxu0
    %v2427 = vadd.f32 %v2335, %v2426
    %2428 = vmatmul.bf16.gmra.mxu0 %v2308
    %v2429 = vpop.f32.mrf.mxu0
    %v2430 = vadd.f32 %v2335, %v2429
    %v2431 = vpop.f32.mrf.mxu0
    %v2432 = vadd.f32 %v2335, %v2431
    %2433 = vmatmul.bf16.gmra.mxu0 %v2309
    %v2434 = vpop.f32.mrf.mxu0
    %v2435 = vadd.f32 %v2335, %v2434
    %v2436 = vpop.f32.mrf.mxu0
    %v2437 = vadd.f32 %v2335, %v2436
    %2438 = vmatmul.bf16.gmra.mxu0 %v2310
    %v2439 = vpop.f32.mrf.mxu0
    %v2440 = vadd.f32 %v2335, %v2439
    %v2441 = vpop.f32.mrf.mxu0
    %v2442 = vadd.f32 %v2335, %v2441
    %2443 = vmatmul.bf16.gmra.mxu0 %v2311
    %v2444 = vpop.f32.mrf.mxu0
    %v2445 = vadd.f32 %v2335, %v2444
    %v2446 = vpop.f32.mrf.mxu0
    %v2447 = vadd.f32 %v2335, %v2446
    %2448 = vmatmul.bf16.gmra.mxu0 %v2312
    %v2449 = vpop.f32.mrf.mxu0
    %v2450 = vadd.f32 %v2335, %v2449
    %v2451 = vpop.f32.mrf.mxu0
    %v2452 = vadd.f32 %v2335, %v2451
    %2453 = vmatmul.bf16.gmra.mxu0 %v2313
    %v2454 = vpop.f32.mrf.mxu0
    %v2455 = vadd.f32 %v2335, %v2454
    %v2456 = vpop.f32.mrf.mxu0
    %v2457 = vadd.f32 %v2335, %v2456
    %2458 = vmatmul.bf16.gmra.mxu0 %v2314
    %v2459 = vpop.f32.mrf.mxu0
    %v2460 = vadd.f32 %v2335, %v2459
    %v2461 = vpop.f32.mrf.mxu0
    %v2462 = vadd.f32 %v2335, %v2461
    %2463 = vmatmul.bf16.gmra.mxu0 %v2315
    %v2464 = vpop.f32.mrf.mxu0
    %v2465 = vadd.f32 %v2335, %v2464
    %v2466 = vpop.f32.mrf.mxu0
    %v2467 = vadd.f32 %v2335, %v2466
    %2468 = vmatmul.bf16.gmra.mxu0 %v2316
    %v2469 = vpop.f32.mrf.mxu0
    %v2470 = vadd.f32 %v2335, %v2469
    %v2471 = vpop.f32.mrf.mxu0
    %v2472 = vadd.f32 %v2335, %v2471
    %2473 = vdwg.mxu0
    %2474 = vst [vmem:[#allocation8] sm:$0xff] %v2395
    %2475 = vst [vmem:[#allocation8 + $0x8] sm:$0xff] %v2397
    %2476 = vst [vmem:[#allocation8 + $0x10] sm:$0xff] %v2400
    %2477 = vst [vmem:[#allocation8 + $0x18] sm:$0xff] %v2402
    %2478 = vst [vmem:[#allocation8 + $0x20] sm:$0xff] %v2405
    %2479 = vst [vmem:[#allocation8 + $0x28] sm:$0xff] %v2407
    %2480 = vst [vmem:[#allocation8 + $0x30] sm:$0xff] %v2410
    %2481 = vst [vmem:[#allocation8 + $0x38] sm:$0xff] %v2412
    %2482 = vst [vmem:[#allocation8 + $0x40] sm:$0xff] %v2415
    %2483 = vst [vmem:[#allocation8 + $0x48] sm:$0xff] %v2417
    %2484 = vst [vmem:[#allocation8 + $0x50] sm:$0xff] %v2420
    %2485 = vst [vmem:[#allocation8 + $0x58] sm:$0xff] %v2422
    %2486 = vst [vmem:[#allocation8 + $0x60] sm:$0xff] %v2425
    %2487 = vst [vmem:[#allocation8 + $0x68] sm:$0xff] %v2427
    %2488 = vst [vmem:[#allocation8 + $0x70] sm:$0xff] %v2430
    %2489 = vst [vmem:[#allocation8 + $0x78] sm:$0xff] %v2432
    %2490 = vst [vmem:[#allocation8 + $0x80] sm:$0xff] %v2435
    %2491 = vst [vmem:[#allocation8 + $0x88] sm:$0xff] %v2437
    %2492 = vst [vmem:[#allocation8 + $0x90] sm:$0xff] %v2440
    %2493 = vst [vmem:[#allocation8 + $0x98] sm:$0xff] %v2442
    %2494 = vst [vmem:[#allocation8 + $0xa0] sm:$0xff] %v2445
    %2495 = vst [vmem:[#allocation8 + $0xa8] sm:$0xff] %v2447
    %2496 = vst [vmem:[#allocation8 + $0xb0] sm:$0xff] %v2450
    %2497 = vst [vmem:[#allocation8 + $0xb8] sm:$0xff] %v2452
    %2498 = vst [vmem:[#allocation8 + $0xc0] sm:$0xff] %v2455
    %2499 = vst [vmem:[#allocation8 + $0xc8] sm:$0xff] %v2457
    %2500 = vst [vmem:[#allocation8 + $0xd0] sm:$0xff] %v2460
    %2501 = vst [vmem:[#allocation8 + $0xd8] sm:$0xff] %v2462
    %2502 = vst [vmem:[#allocation8 + $0xe0] sm:$0xff] %v2465
    %2503 = vst [vmem:[#allocation8 + $0xe8] sm:$0xff] %v2467
    %2504 = vst [vmem:[#allocation8 + $0xf0] sm:$0xff] %v2470
    %2505 = vst [vmem:[#allocation8 + $0xf8] sm:$0xff] %v2472
    // Predicated region
    $region42: #{tpu_custom_call.1} parent=1 // pred_check
      _
    $region43: #{tpu_custom_call.1} parent=1 // pred_check_branch
      %2507 = sbr.rel (0) target = $region45
    $region44: #{tpu_custom_call.1} parent=1 // pred_region
      %2509 = vsyncadd [#allocation4], 0
      %s2510 = sshll.u32 [#allocation8], 4
      %s2511 = int_to_ptr.vmem [resolvable:$true] %s2510
      %s2512 = sshll.u32 %s7, 4
      %s2513 = int_to_ptr.hbm [resolvable:$true] %s2512
      %2518 = dma.vmem_to_hbm [thread:$0]  %s2511, 4096, %s2513, [#allocation4], 128, 128, 8
    $region45: #{tpu_custom_call.1} parent=1 // pred_fallthru
      _
    // Predicated region
    $region46: #{tpu_custom_call.1} parent=1 // pred_check
      _
    $region47: #{tpu_custom_call.1} parent=1 // pred_check_branch
      %2520 = sbr.rel (0) target = $region49
    $region48: #{tpu_custom_call.1} parent=1 // pred_region
      %2522 = dma.done [#allocation4], 4096
    $region49: #{tpu_custom_call.1} parent=1 // pred_fallthru
      _
    %2523 = vsyncpa [#allocation3], 1
    %2524 = vsyncpa [#allocation6], 1
    %2525 = vsyncpa [#allocation4], 1

</llo_original>
